<compile_context>
chip_gen: v7x
topology: tpu7x:2x2x1
jax: 0.10.0
libtpu: 0.0.40
codegen_flags: <defaults>
</compile_context>

<pallas_src>
import math

import jax
import jax.numpy as jnp
from jax import lax
from jax.experimental import pallas as pl
from jax.experimental.pallas import tpu as pltpu

NEG_SLOPE = 0.01

# Channel-count threshold below which the convs run as VPU broadcast-FMAs
# instead of MXU matmuls (MXU operands would be padded to 128/256).
_VPU_CONV_MAX_DIM = 32


def _leaky_relu(v):
    return jnp.where(v >= 0, v, NEG_SLOPE * v)


# -----------------------------------------------------------------------------
# Pallas kernel (channels-first, flattened-spatial, lane-dense layout)
# -----------------------------------------------------------------------------
def _make_resblock_kernel(W, N):
    lane_aligned = (N % 128) == 0

    def _roll_lanes(v, shift):
        """Circular roll of v (C, N) along the lane axis: r[i] = v[i-shift]."""
        s = shift % N                       # static, non-negative
        if s == 0:
            return v
        if lane_aligned:
            return pltpu.roll(v, s, 1)      # XLU lane rotation
        return jnp.roll(v, s, axis=1)       # fallback for non-128-multiple N

    def _cmatmul(w, v):
        """(M,K) x (K,N) -> (M,N) f32.  VPU broadcast-FMA path for the tiny
        channel counts typical of octree levels; MXU dot otherwise."""
        M, K = w.shape
        if M <= _VPU_CONV_MAX_DIM and K <= _VPU_CONV_MAX_DIM:
            wf = w.astype(jnp.float32)
            acc = None
            for k in range(K):
                term = wf[:, k:k + 1] * v[k:k + 1, :]
                acc = term if acc is None else acc + term
            return acc
        return jnp.dot(w.astype(v.dtype), v, preferred_element_type=jnp.float32)

    def kernel(x_ref, m_ref, e_ref, w1_ref, b1_ref, w2_ref, b2_ref,
               w3_ref, w4_ref, b34_ref, o_ref):
        m = m_ref[0].astype(jnp.float32)              # (1, N), {0,1}
        x = x_ref[0].astype(jnp.float32) * m          # (CIN, N), re-masked

        # Precomputed image-boundary masks (float {0,1}), one row each.
        e = e_ref[...]                                # (4, N)
        row0, rowL = e[0:1, :], e[1:2, :]
        col0, colL = e[2:3, :], e[3:4, :]
        nrow0, nrowL = 1.0 - row0, 1.0 - rowL
        ncol0, ncolL = 1.0 - col0, 1.0 - colL

        def _clamp_shift(v, d, step, lo, hi, nlo, nhi):
            """Dense equivalent of the clamped index-scatter by d along one
            spatial axis (valid for |d| == 1 only, i.e. 3x3 kernels).
            `step` is the flat stride of the axis (W for H, 1 for W)."""
            if d == 0:
                return v
            r = _roll_lanes(v, d * step)              # r[i] = v[i - d*step]
            if d < 0:   # fold onto the low edge; nothing lands on the high edge
                return r * nhi + v * lo
            return r * nlo + v * hi

        # block1: 1x1 conv + leaky relu.
        y1 = _leaky_relu(_cmatmul(w1_ref[...], x) + m * b1_ref[...])   # (CB, N)

        # block2: 3x3 conv.  Accumulate the nine clamp-shifted taps one
        # product at a time (no sublane concat); reuse the three H-shifted
        # copies across the three W-shifts (8 rolls total).
        acc = None
        t = 0
        for dh in (-1, 0, 1):                          # ky - 1
            vh = _clamp_shift(y1, dh, W, row0, rowL, nrow0, nrowL)
            for dw in (-1, 0, 1):                      # kx - 1
                tap = _clamp_shift(vh, dw, 1, col0, colL, ncol0, ncolL)
                c = _cmatmul(w2_ref[t], tap)
                acc = c if acc is None else acc + c
                t += 1
        # keep the trailing "* mask": clamped shifts leak into masked-off cells
        y2 = _leaky_relu((acc + m * b2_ref[...]) * m)                  # (CB, N)

        # block3 + block4 skip + epilogue; the final *0.5 is folded into the
        # weights and the two biases are merged (b34 = 0.5*(b3+b4)).
        out = (_cmatmul(w3_ref[...], y2) + _cmatmul(w4_ref[...], x)
               + m * b34_ref[...])                                     # (COUT,N)
        o_ref[0] = _leaky_relu(out).astype(o_ref.dtype)

    return kernel


def octree_resblock(x, mask, params, *, dtype=jnp.float32):
    """x: (B,H,W,CIN) f32 (zero at non-entries), mask: (B,H,W,1) {0,1} f32."""
    B, H, W, CIN = x.shape
    CB = params["k1"].shape[1]
    COUT = params["k3"].shape[1]
    N = H * W

    # Layout plumbing (outside the kernel): NHWC -> channels-first with the
    # spatial axis flattened onto the lane dimension (lane-dense).
    x_cf = jnp.transpose(x, (0, 3, 1, 2)).reshape(B, CIN, N).astype(dtype)
    m_cf = jnp.transpose(mask, (0, 3, 1, 2)).reshape(B, 1, N)
    m_i8 = (m_cf > 0).astype(jnp.int8)

    # Precomputed image-boundary masks for the clamped 3x3 shifts.
    flat = jnp.arange(N)
    col = flat % W
    edges = jnp.stack([flat < W, flat >= N - W, col == 0, col == W - 1]
                      ).astype(jnp.float32)                            # (4, N)

    w1 = jnp.transpose(params["k1"]).astype(dtype)                     # (CB, CIN)
    b1 = params["b1"].reshape(CB, 1).astype(jnp.float32)
    # 3x3 kernel as 9 per-tap (cout, cin) matrices, tap order = ky*3 + kx.
    w2 = jnp.transpose(params["k2"], (0, 1, 3, 2)).reshape(9, CB, CB).astype(dtype)
    b2 = params["b2"].reshape(CB, 1).astype(jnp.float32)
    w3h = (0.5 * jnp.transpose(params["k3"])).astype(dtype)            # (COUT, CB)
    if params.get("k4") is not None:
        w4h = (0.5 * jnp.transpose(params["k4"])).astype(dtype)        # (COUT, CIN)
        b4 = params["b4"]
    else:  # nin == nout: module's block4 is None -> identity skip (masked x)
        w4h = (0.5 * jnp.eye(COUT, CIN, dtype=jnp.float32)).astype(dtype)
        b4 = jnp.zeros_like(params["b3"])
    b34 = (0.5 * (params["b3"] + b4)).reshape(COUT, 1).astype(jnp.float32)

    def per_b(c):
        return pl.BlockSpec((1, c, N), lambda b: (b, 0, 0))

    def whole(shape):
        return pl.BlockSpec(shape, lambda b, _n=len(shape): (0,) * _n)

    grid_spec = pltpu.PrefetchScalarGridSpec(
        num_scalar_prefetch=0,
        grid=(B,),
        in_specs=[
            per_b(CIN),                 # x      (lane-dense)
            per_b(1),                   # mask   (int8)
            whole((4, N)),              # edge masks
            whole((CB, CIN)),           # w1
            whole((CB, 1)),             # b1
            whole((9, CB, CB)),         # w2 per-tap
            whole((CB, 1)),             # b2
            whole((COUT, CB)),          # w3 (0.5 folded)
            whole((COUT, CIN)),         # w4 (0.5 folded)
            whole((COUT, 1)),           # b34 = 0.5*(b3+b4)
        ],
        out_specs=per_b(COUT),          # lane-dense output store
    )

    out_cf = pl.pallas_call(
        _make_resblock_kernel(W, N),
        out_shape=jax.ShapeDtypeStruct((B, COUT, N), dtype),
        grid_spec=grid_spec,
        compiler_params=pltpu.CompilerParams(
            # batch images are independent -> shard across v7x's 2 TCs
            dimension_semantics=("parallel",),
            # modest scoped-VMEM raise; safe on all generations incl. v7x.
            vmem_limit_bytes=32 * 1024 * 1024),
    )(x_cf, m_i8, edges, w1, b1, w2, b2, w3h, w4h, b34)

    return jnp.transpose(out_cf.reshape(B, COUT, H, W), (0, 2, 3, 1))


# -----------------------------------------------------------------------------
# Pure-JAX reference (dense-masked mirror of the PyTorch sparse semantics)
# -----------------------------------------------------------------------------
def _ref_shift_accumulate(v, d, axis):
    if d == 0:
        return v
    n = v.shape[axis]
    sl = lambda s, e: lax.slice_in_dim(v, s, e, axis=axis)
    if d == -1:
        return jnp.concatenate(
            [sl(0, 1) + sl(1, 2), sl(2, n), jnp.zeros_like(sl(0, 1))], axis=axis)
    return jnp.concatenate(
        [jnp.zeros_like(sl(0, 1)), sl(0, n - 2), sl(n - 2, n - 1) + sl(n - 1, n)],
        axis=axis)


def _ref_mm(v, k):
    b, h, w, c = v.shape
    y = jnp.dot(v.reshape(b * h * w, c), k, preferred_element_type=jnp.float32)
    return y.reshape(b, h, w, k.shape[1])


def _ref_conv1x1(v, m, k, b):
    return (_ref_mm(v, k) + m * b) * m


def _ref_conv3x3(v, m, k, b):
    acc = None
    for ky in range(3):
        for kx in range(3):
            t = _ref_mm(v, k[ky, kx])
            t = _ref_shift_accumulate(t, ky - 1, axis=1)   # H
            t = _ref_shift_accumulate(t, kx - 1, axis=2)   # W
            acc = t if acc is None else acc + t
    return (acc + m * b) * m


def resblock_reference(x, m, p):
    y1 = _leaky_relu(_ref_conv1x1(x, m, p["k1"], p["b1"]))
    y2 = _leaky_relu(_ref_conv3x3(y1, m, p["k2"], p["b2"]))
    y3 = _ref_conv1x1(y2, m, p["k3"], p["b3"])
    skip = (_ref_conv1x1(x, m, p["k4"], p["b4"])
            if p.get("k4") is not None else x)
    return _leaky_relu((y3 + skip) * 0.5)


# -----------------------------------------------------------------------------
# Parameter init mirroring OctreeConv2D.__init__ (uniform(-stdv, stdv))
# -----------------------------------------------------------------------------
def init_params(key, nin, nout, bottleneck=4):
    cb = int(max(nout // bottleneck, 1))

    def uconv(k, size, cin, cout):
        stdv = 1.0 / math.sqrt(float(size * size * cin))
        kk, kb = jax.random.split(k)
        kern = jax.random.uniform(kk, (size, size, cin, cout), jnp.float32,
                                  -stdv, stdv)
        bias = jax.random.uniform(kb, (1, cout), jnp.float32, -stdv, stdv)
        return kern, bias

    keys = jax.random.split(key, 4)
    k1, b1 = uconv(keys[0], 1, nin, cb)
    k2, b2 = uconv(keys[1], 3, cb, cb)
    k3, b3 = uconv(keys[2], 1, cb, nout)
    k4, b4 = uconv(keys[3], 1, nin, nout)
    return dict(k1=k1[0, 0], b1=b1,        # 1x1 kernels flattened to (cin, cout)
                k2=k2, b2=b2,
                k3=k3[0, 0], b3=b3,
                k4=k4[0, 0], b4=b4)


if __name__ == "__main__":
    key = jax.random.PRNGKey(0)
    B, H, W, NIN, NOUT = 2, 16, 16, 4, 8   # nin != nout -> skip conv (block4)

    kx_, km_, kp_ = jax.random.split(key, 3)
    mask = (jax.random.uniform(km_, (B, H, W, 1)) > 0.5).astype(jnp.float32)
    x = jax.random.normal(kx_, (B, H, W, NIN), jnp.float32) * mask
    params = init_params(kp_, NIN, NOUT)

    ref = resblock_reference(x, mask, params)

    # f32 I/O path: tight check against the dense-masked reference.
    out = jax.block_until_ready(octree_resblock(x, mask, params))
    assert out.shape == (B, H, W, NOUT)
    assert jnp.allclose(out, ref, atol=1e-4, rtol=1e-4)

    # bf16 I/O path (halves HBM traffic for x / weights / output): loose check.
    out_bf16 = jax.block_until_ready(
        octree_resblock(x, mask, params, dtype=jnp.bfloat16))
    assert jnp.allclose(out_bf16.astype(jnp.float32), ref, atol=5e-2, rtol=5e-2)

    print("KERNEL_OK")
</pallas_src>

<mosaic_0001>
module attributes {stable_mosaic.version = 11 : i64} {
  func.func @kernel(%arg0: i32, %arg1: memref<1x4x256xf32, #tpu.memory_space<vmem>>, %arg2: memref<1x1x256xi8, #tpu.memory_space<vmem>>, %arg3: memref<4x256xf32, #tpu.memory_space<vmem>>, %arg4: memref<2x4xf32, #tpu.memory_space<vmem>>, %arg5: memref<2x1xf32, #tpu.memory_space<vmem>>, %arg6: memref<9x2x2xf32, #tpu.memory_space<vmem>>, %arg7: memref<2x1xf32, #tpu.memory_space<vmem>>, %arg8: memref<8x2xf32, #tpu.memory_space<vmem>>, %arg9: memref<8x4xf32, #tpu.memory_space<vmem>>, %arg10: memref<8x1xf32, #tpu.memory_space<vmem>>, %arg11: memref<1x8x256xf32, #tpu.memory_space<vmem>>) attributes {dimension_semantics = [#tpu.dimension_semantics<parallel>], iteration_bounds = array<i64: 2>, scalar_prefetch = 0 : i64, scratch_operands = 0 : i64, tpu.core_type = #tpu.core_type<tc>, window_params = [{transform_indices = @transform_0, window_bounds = array<i64: 1, 4, 256>}, {transform_indices = @transform_1, window_bounds = array<i64: 1, 1, 256>}, {pipeline_mode = #tpu.pipeline_mode<synchronous>, transform_indices = @transform_2, window_bounds = array<i64: 4, 256>}, {pipeline_mode = #tpu.pipeline_mode<synchronous>, transform_indices = @transform_3, window_bounds = array<i64: 2, 4>}, {pipeline_mode = #tpu.pipeline_mode<synchronous>, transform_indices = @transform_4, window_bounds = array<i64: 2, 1>}, {pipeline_mode = #tpu.pipeline_mode<synchronous>, transform_indices = @transform_5, window_bounds = array<i64: 9, 2, 2>}, {pipeline_mode = #tpu.pipeline_mode<synchronous>, transform_indices = @transform_6, window_bounds = array<i64: 2, 1>}, {pipeline_mode = #tpu.pipeline_mode<synchronous>, transform_indices = @transform_7, window_bounds = array<i64: 8, 2>}, {pipeline_mode = #tpu.pipeline_mode<synchronous>, transform_indices = @transform_8, window_bounds = array<i64: 8, 4>}, {pipeline_mode = #tpu.pipeline_mode<synchronous>, transform_indices = @transform_9, window_bounds = array<i64: 8, 1>}, {transform_indices = @transform_10, window_bounds = array<i64: 1, 8, 256>}]} {
    %c0 = arith.constant 0 : index
    %c0_0 = arith.constant 0 : index
    %c0_1 = arith.constant 0 : index
    %0 = vector.load %arg2[%c0, %c0_0, %c0_1] : memref<1x1x256xi8, #tpu.memory_space<vmem>>, vector<1x1x256xi8>
    %1 = vector.shape_cast %0 : vector<1x1x256xi8> to vector<1x256xi8>
    %2 = arith.sitofp %1 : vector<1x256xi8> to vector<1x256xf32>
    %c0_2 = arith.constant 0 : index
    %c0_3 = arith.constant 0 : index
    %c0_4 = arith.constant 0 : index
    %3 = vector.load %arg1[%c0_2, %c0_3, %c0_4] : memref<1x4x256xf32, #tpu.memory_space<vmem>>, vector<1x4x256xf32>
    %4 = vector.shape_cast %3 : vector<1x4x256xf32> to vector<4x256xf32>
    %5 = vector.broadcast %2 : vector<1x256xf32> to vector<4x256xf32>
    %6 = arith.mulf %4, %5 : vector<4x256xf32>
    %c0_5 = arith.constant 0 : index
    %c0_6 = arith.constant 0 : index
    %7 = vector.load %arg3[%c0_5, %c0_6] : memref<4x256xf32, #tpu.memory_space<vmem>>, vector<4x256xf32>
    %8 = vector.extract_strided_slice %7 {offsets = [0, 0], sizes = [1, 256], strides = [1, 1]} : vector<4x256xf32> to vector<1x256xf32>
    %9 = vector.extract_strided_slice %7 {offsets = [1, 0], sizes = [1, 256], strides = [1, 1]} : vector<4x256xf32> to vector<1x256xf32>
    %10 = vector.extract_strided_slice %7 {offsets = [2, 0], sizes = [1, 256], strides = [1, 1]} : vector<4x256xf32> to vector<1x256xf32>
    %11 = vector.extract_strided_slice %7 {offsets = [3, 0], sizes = [1, 256], strides = [1, 1]} : vector<4x256xf32> to vector<1x256xf32>
    %cst = arith.constant 1.000000e+00 : f32
    %12 = vector.broadcast %cst : f32 to vector<1x256xf32>
    %13 = arith.subf %12, %8 : vector<1x256xf32>
    %cst_7 = arith.constant 1.000000e+00 : f32
    %14 = vector.broadcast %cst_7 : f32 to vector<1x256xf32>
    %15 = arith.subf %14, %9 : vector<1x256xf32>
    %cst_8 = arith.constant 1.000000e+00 : f32
    %16 = vector.broadcast %cst_8 : f32 to vector<1x256xf32>
    %17 = arith.subf %16, %10 : vector<1x256xf32>
    %cst_9 = arith.constant 1.000000e+00 : f32
    %18 = vector.broadcast %cst_9 : f32 to vector<1x256xf32>
    %19 = arith.subf %18, %11 : vector<1x256xf32>
    %c0_10 = arith.constant 0 : index
    %c0_11 = arith.constant 0 : index
    %20 = vector.load %arg4[%c0_10, %c0_11] : memref<2x4xf32, #tpu.memory_space<vmem>>, vector<2x4xf32>
    %21 = vector.extract_strided_slice %20 {offsets = [0, 0], sizes = [2, 1], strides = [1, 1]} : vector<2x4xf32> to vector<2x1xf32>
    %22 = vector.extract_strided_slice %6 {offsets = [0, 0], sizes = [1, 256], strides = [1, 1]} : vector<4x256xf32> to vector<1x256xf32>
    %23 = vector.broadcast %21 : vector<2x1xf32> to vector<2x256xf32>
    %24 = vector.broadcast %22 : vector<1x256xf32> to vector<2x256xf32>
    %25 = arith.mulf %23, %24 : vector<2x256xf32>
    %26 = vector.extract_strided_slice %20 {offsets = [0, 1], sizes = [2, 1], strides = [1, 1]} : vector<2x4xf32> to vector<2x1xf32>
    %27 = vector.extract_strided_slice %6 {offsets = [1, 0], sizes = [1, 256], strides = [1, 1]} : vector<4x256xf32> to vector<1x256xf32>
    %28 = vector.broadcast %26 : vector<2x1xf32> to vector<2x256xf32>
    %29 = vector.broadcast %27 : vector<1x256xf32> to vector<2x256xf32>
    %30 = arith.mulf %28, %29 : vector<2x256xf32>
    %31 = arith.addf %25, %30 : vector<2x256xf32>
    %32 = vector.extract_strided_slice %20 {offsets = [0, 2], sizes = [2, 1], strides = [1, 1]} : vector<2x4xf32> to vector<2x1xf32>
    %33 = vector.extract_strided_slice %6 {offsets = [2, 0], sizes = [1, 256], strides = [1, 1]} : vector<4x256xf32> to vector<1x256xf32>
    %34 = vector.broadcast %32 : vector<2x1xf32> to vector<2x256xf32>
    %35 = vector.broadcast %33 : vector<1x256xf32> to vector<2x256xf32>
    %36 = arith.mulf %34, %35 : vector<2x256xf32>
    %37 = arith.addf %31, %36 : vector<2x256xf32>
    %38 = vector.extract_strided_slice %20 {offsets = [0, 3], sizes = [2, 1], strides = [1, 1]} : vector<2x4xf32> to vector<2x1xf32>
    %39 = vector.extract_strided_slice %6 {offsets = [3, 0], sizes = [1, 256], strides = [1, 1]} : vector<4x256xf32> to vector<1x256xf32>
    %40 = vector.broadcast %38 : vector<2x1xf32> to vector<2x256xf32>
    %41 = vector.broadcast %39 : vector<1x256xf32> to vector<2x256xf32>
    %42 = arith.mulf %40, %41 : vector<2x256xf32>
    %43 = arith.addf %37, %42 : vector<2x256xf32>
    %c0_12 = arith.constant 0 : index
    %c0_13 = arith.constant 0 : index
    %44 = vector.load %arg5[%c0_12, %c0_13] : memref<2x1xf32, #tpu.memory_space<vmem>>, vector<2x1xf32>
    %45 = vector.broadcast %2 : vector<1x256xf32> to vector<2x256xf32>
    %46 = vector.broadcast %44 : vector<2x1xf32> to vector<2x256xf32>
    %47 = arith.mulf %45, %46 : vector<2x256xf32>
    %48 = arith.addf %43, %47 : vector<2x256xf32>
    %cst_14 = arith.constant 0.000000e+00 : f32
    %49 = vector.broadcast %cst_14 : f32 to vector<2x256xf32>
    %50 = arith.cmpf oge, %48, %49 : vector<2x256xf32>
    %cst_15 = arith.constant 0.00999999977 : f32
    %51 = vector.broadcast %cst_15 : f32 to vector<2x256xf32>
    %52 = arith.mulf %51, %48 : vector<2x256xf32>
    %53 = arith.select %50, %48, %52 : vector<2x256xi1>, vector<2x256xf32>
    %c240_i32 = arith.constant 240 : i32
    %54 = tpu.dynamic_rotate %53 by %c240_i32 dim 1 : vector<2x256xf32>, i32 -> vector<2x256xf32>
    %55 = vector.broadcast %15 : vector<1x256xf32> to vector<2x256xf32>
    %56 = arith.mulf %54, %55 : vector<2x256xf32>
    %57 = vector.broadcast %8 : vector<1x256xf32> to vector<2x256xf32>
    %58 = arith.mulf %53, %57 : vector<2x256xf32>
    %59 = arith.addf %56, %58 : vector<2x256xf32>
    %c255_i32 = arith.constant 255 : i32
    %60 = tpu.dynamic_rotate %59 by %c255_i32 dim 1 : vector<2x256xf32>, i32 -> vector<2x256xf32>
    %61 = vector.broadcast %19 : vector<1x256xf32> to vector<2x256xf32>
    %62 = arith.mulf %60, %61 : vector<2x256xf32>
    %63 = vector.broadcast %10 : vector<1x256xf32> to vector<2x256xf32>
    %64 = arith.mulf %59, %63 : vector<2x256xf32>
    %65 = arith.addf %62, %64 : vector<2x256xf32>
    %c0_16 = arith.constant 0 : index
    %c0_17 = arith.constant 0 : index
    %c0_18 = arith.constant 0 : index
    %66 = vector.load %arg6[%c0_16, %c0_17, %c0_18] : memref<9x2x2xf32, #tpu.memory_space<vmem>>, vector<1x2x2xf32>
    %67 = vector.shape_cast %66 : vector<1x2x2xf32> to vector<2x2xf32>
    %68 = vector.extract_strided_slice %67 {offsets = [0, 0], sizes = [2, 1], strides = [1, 1]} : vector<2x2xf32> to vector<2x1xf32>
    %69 = vector.extract_strided_slice %65 {offsets = [0, 0], sizes = [1, 256], strides = [1, 1]} : vector<2x256xf32> to vector<1x256xf32>
    %70 = vector.broadcast %68 : vector<2x1xf32> to vector<2x256xf32>
    %71 = vector.broadcast %69 : vector<1x256xf32> to vector<2x256xf32>
    %72 = arith.mulf %70, %71 : vector<2x256xf32>
    %73 = vector.extract_strided_slice %67 {offsets = [0, 1], sizes = [2, 1], strides = [1, 1]} : vector<2x2xf32> to vector<2x1xf32>
    %74 = vector.extract_strided_slice %65 {offsets = [1, 0], sizes = [1, 256], strides = [1, 1]} : vector<2x256xf32> to vector<1x256xf32>
    %75 = vector.broadcast %73 : vector<2x1xf32> to vector<2x256xf32>
    %76 = vector.broadcast %74 : vector<1x256xf32> to vector<2x256xf32>
    %77 = arith.mulf %75, %76 : vector<2x256xf32>
    %78 = arith.addf %72, %77 : vector<2x256xf32>
    %c1 = arith.constant 1 : index
    %c0_19 = arith.constant 0 : index
    %c0_20 = arith.constant 0 : index
    %79 = vector.load %arg6[%c1, %c0_19, %c0_20] : memref<9x2x2xf32, #tpu.memory_space<vmem>>, vector<1x2x2xf32>
    %80 = vector.shape_cast %79 : vector<1x2x2xf32> to vector<2x2xf32>
    %81 = vector.extract_strided_slice %80 {offsets = [0, 0], sizes = [2, 1], strides = [1, 1]} : vector<2x2xf32> to vector<2x1xf32>
    %82 = vector.extract_strided_slice %59 {offsets = [0, 0], sizes = [1, 256], strides = [1, 1]} : vector<2x256xf32> to vector<1x256xf32>
    %83 = vector.broadcast %81 : vector<2x1xf32> to vector<2x256xf32>
    %84 = vector.broadcast %82 : vector<1x256xf32> to vector<2x256xf32>
    %85 = arith.mulf %83, %84 : vector<2x256xf32>
    %86 = vector.extract_strided_slice %80 {offsets = [0, 1], sizes = [2, 1], strides = [1, 1]} : vector<2x2xf32> to vector<2x1xf32>
    %87 = vector.extract_strided_slice %59 {offsets = [1, 0], sizes = [1, 256], strides = [1, 1]} : vector<2x256xf32> to vector<1x256xf32>
    %88 = vector.broadcast %86 : vector<2x1xf32> to vector<2x256xf32>
    %89 = vector.broadcast %87 : vector<1x256xf32> to vector<2x256xf32>
    %90 = arith.mulf %88, %89 : vector<2x256xf32>
    %91 = arith.addf %85, %90 : vector<2x256xf32>
    %92 = arith.addf %78, %91 : vector<2x256xf32>
    %c1_i32 = arith.constant 1 : i32
    %93 = tpu.dynamic_rotate %59 by %c1_i32 dim 1 : vector<2x256xf32>, i32 -> vector<2x256xf32>
    %94 = vector.broadcast %17 : vector<1x256xf32> to vector<2x256xf32>
    %95 = arith.mulf %93, %94 : vector<2x256xf32>
    %96 = vector.broadcast %11 : vector<1x256xf32> to vector<2x256xf32>
    %97 = arith.mulf %59, %96 : vector<2x256xf32>
    %98 = arith.addf %95, %97 : vector<2x256xf32>
    %c2 = arith.constant 2 : index
    %c0_21 = arith.constant 0 : index
    %c0_22 = arith.constant 0 : index
    %99 = vector.load %arg6[%c2, %c0_21, %c0_22] : memref<9x2x2xf32, #tpu.memory_space<vmem>>, vector<1x2x2xf32>
    %100 = vector.shape_cast %99 : vector<1x2x2xf32> to vector<2x2xf32>
    %101 = vector.extract_strided_slice %100 {offsets = [0, 0], sizes = [2, 1], strides = [1, 1]} : vector<2x2xf32> to vector<2x1xf32>
    %102 = vector.extract_strided_slice %98 {offsets = [0, 0], sizes = [1, 256], strides = [1, 1]} : vector<2x256xf32> to vector<1x256xf32>
    %103 = vector.broadcast %101 : vector<2x1xf32> to vector<2x256xf32>
    %104 = vector.broadcast %102 : vector<1x256xf32> to vector<2x256xf32>
    %105 = arith.mulf %103, %104 : vector<2x256xf32>
    %106 = vector.extract_strided_slice %100 {offsets = [0, 1], sizes = [2, 1], strides = [1, 1]} : vector<2x2xf32> to vector<2x1xf32>
    %107 = vector.extract_strided_slice %98 {offsets = [1, 0], sizes = [1, 256], strides = [1, 1]} : vector<2x256xf32> to vector<1x256xf32>
    %108 = vector.broadcast %106 : vector<2x1xf32> to vector<2x256xf32>
    %109 = vector.broadcast %107 : vector<1x256xf32> to vector<2x256xf32>
    %110 = arith.mulf %108, %109 : vector<2x256xf32>
    %111 = arith.addf %105, %110 : vector<2x256xf32>
    %112 = arith.addf %92, %111 : vector<2x256xf32>
    %c255_i32_23 = arith.constant 255 : i32
    %113 = tpu.dynamic_rotate %53 by %c255_i32_23 dim 1 : vector<2x256xf32>, i32 -> vector<2x256xf32>
    %114 = vector.broadcast %19 : vector<1x256xf32> to vector<2x256xf32>
    %115 = arith.mulf %113, %114 : vector<2x256xf32>
    %116 = vector.broadcast %10 : vector<1x256xf32> to vector<2x256xf32>
    %117 = arith.mulf %53, %116 : vector<2x256xf32>
    %118 = arith.addf %115, %117 : vector<2x256xf32>
    %c3 = arith.constant 3 : index
    %c0_24 = arith.constant 0 : index
    %c0_25 = arith.constant 0 : index
    %119 = vector.load %arg6[%c3, %c0_24, %c0_25] : memref<9x2x2xf32, #tpu.memory_space<vmem>>, vector<1x2x2xf32>
    %120 = vector.shape_cast %119 : vector<1x2x2xf32> to vector<2x2xf32>
    %121 = vector.extract_strided_slice %120 {offsets = [0, 0], sizes = [2, 1], strides = [1, 1]} : vector<2x2xf32> to vector<2x1xf32>
    %122 = vector.extract_strided_slice %118 {offsets = [0, 0], sizes = [1, 256], strides = [1, 1]} : vector<2x256xf32> to vector<1x256xf32>
    %123 = vector.broadcast %121 : vector<2x1xf32> to vector<2x256xf32>
    %124 = vector.broadcast %122 : vector<1x256xf32> to vector<2x256xf32>
    %125 = arith.mulf %123, %124 : vector<2x256xf32>
    %126 = vector.extract_strided_slice %120 {offsets = [0, 1], sizes = [2, 1], strides = [1, 1]} : vector<2x2xf32> to vector<2x1xf32>
    %127 = vector.extract_strided_slice %118 {offsets = [1, 0], sizes = [1, 256], strides = [1, 1]} : vector<2x256xf32> to vector<1x256xf32>
    %128 = vector.broadcast %126 : vector<2x1xf32> to vector<2x256xf32>
    %129 = vector.broadcast %127 : vector<1x256xf32> to vector<2x256xf32>
    %130 = arith.mulf %128, %129 : vector<2x256xf32>
    %131 = arith.addf %125, %130 : vector<2x256xf32>
    %132 = arith.addf %112, %131 : vector<2x256xf32>
    %c4 = arith.constant 4 : index
    %c0_26 = arith.constant 0 : index
    %c0_27 = arith.constant 0 : index
    %133 = vector.load %arg6[%c4, %c0_26, %c0_27] : memref<9x2x2xf32, #tpu.memory_space<vmem>>, vector<1x2x2xf32>
    %134 = vector.shape_cast %133 : vector<1x2x2xf32> to vector<2x2xf32>
    %135 = vector.extract_strided_slice %134 {offsets = [0, 0], sizes = [2, 1], strides = [1, 1]} : vector<2x2xf32> to vector<2x1xf32>
    %136 = vector.extract_strided_slice %53 {offsets = [0, 0], sizes = [1, 256], strides = [1, 1]} : vector<2x256xf32> to vector<1x256xf32>
    %137 = vector.broadcast %135 : vector<2x1xf32> to vector<2x256xf32>
    %138 = vector.broadcast %136 : vector<1x256xf32> to vector<2x256xf32>
    %139 = arith.mulf %137, %138 : vector<2x256xf32>
    %140 = vector.extract_strided_slice %134 {offsets = [0, 1], sizes = [2, 1], strides = [1, 1]} : vector<2x2xf32> to vector<2x1xf32>
    %141 = vector.extract_strided_slice %53 {offsets = [1, 0], sizes = [1, 256], strides = [1, 1]} : vector<2x256xf32> to vector<1x256xf32>
    %142 = vector.broadcast %140 : vector<2x1xf32> to vector<2x256xf32>
    %143 = vector.broadcast %141 : vector<1x256xf32> to vector<2x256xf32>
    %144 = arith.mulf %142, %143 : vector<2x256xf32>
    %145 = arith.addf %139, %144 : vector<2x256xf32>
    %146 = arith.addf %132, %145 : vector<2x256xf32>
    %c1_i32_28 = arith.constant 1 : i32
    %147 = tpu.dynamic_rotate %53 by %c1_i32_28 dim 1 : vector<2x256xf32>, i32 -> vector<2x256xf32>
    %148 = vector.broadcast %17 : vector<1x256xf32> to vector<2x256xf32>
    %149 = arith.mulf %147, %148 : vector<2x256xf32>
    %150 = vector.broadcast %11 : vector<1x256xf32> to vector<2x256xf32>
    %151 = arith.mulf %53, %150 : vector<2x256xf32>
    %152 = arith.addf %149, %151 : vector<2x256xf32>
    %c5 = arith.constant 5 : index
    %c0_29 = arith.constant 0 : index
    %c0_30 = arith.constant 0 : index
    %153 = vector.load %arg6[%c5, %c0_29, %c0_30] : memref<9x2x2xf32, #tpu.memory_space<vmem>>, vector<1x2x2xf32>
    %154 = vector.shape_cast %153 : vector<1x2x2xf32> to vector<2x2xf32>
    %155 = vector.extract_strided_slice %154 {offsets = [0, 0], sizes = [2, 1], strides = [1, 1]} : vector<2x2xf32> to vector<2x1xf32>
    %156 = vector.extract_strided_slice %152 {offsets = [0, 0], sizes = [1, 256], strides = [1, 1]} : vector<2x256xf32> to vector<1x256xf32>
    %157 = vector.broadcast %155 : vector<2x1xf32> to vector<2x256xf32>
    %158 = vector.broadcast %156 : vector<1x256xf32> to vector<2x256xf32>
    %159 = arith.mulf %157, %158 : vector<2x256xf32>
    %160 = vector.extract_strided_slice %154 {offsets = [0, 1], sizes = [2, 1], strides = [1, 1]} : vector<2x2xf32> to vector<2x1xf32>
    %161 = vector.extract_strided_slice %152 {offsets = [1, 0], sizes = [1, 256], strides = [1, 1]} : vector<2x256xf32> to vector<1x256xf32>
    %162 = vector.broadcast %160 : vector<2x1xf32> to vector<2x256xf32>
    %163 = vector.broadcast %161 : vector<1x256xf32> to vector<2x256xf32>
    %164 = arith.mulf %162, %163 : vector<2x256xf32>
    %165 = arith.addf %159, %164 : vector<2x256xf32>
    %166 = arith.addf %146, %165 : vector<2x256xf32>
    %c16_i32 = arith.constant 16 : i32
    %167 = tpu.dynamic_rotate %53 by %c16_i32 dim 1 : vector<2x256xf32>, i32 -> vector<2x256xf32>
    %168 = vector.broadcast %13 : vector<1x256xf32> to vector<2x256xf32>
    %169 = arith.mulf %167, %168 : vector<2x256xf32>
    %170 = vector.broadcast %9 : vector<1x256xf32> to vector<2x256xf32>
    %171 = arith.mulf %53, %170 : vector<2x256xf32>
    %172 = arith.addf %169, %171 : vector<2x256xf32>
    %c255_i32_31 = arith.constant 255 : i32
    %173 = tpu.dynamic_rotate %172 by %c255_i32_31 dim 1 : vector<2x256xf32>, i32 -> vector<2x256xf32>
    %174 = vector.broadcast %19 : vector<1x256xf32> to vector<2x256xf32>
    %175 = arith.mulf %173, %174 : vector<2x256xf32>
    %176 = vector.broadcast %10 : vector<1x256xf32> to vector<2x256xf32>
    %177 = arith.mulf %172, %176 : vector<2x256xf32>
    %178 = arith.addf %175, %177 : vector<2x256xf32>
    %c6 = arith.constant 6 : index
    %c0_32 = arith.constant 0 : index
    %c0_33 = arith.constant 0 : index
    %179 = vector.load %arg6[%c6, %c0_32, %c0_33] : memref<9x2x2xf32, #tpu.memory_space<vmem>>, vector<1x2x2xf32>
    %180 = vector.shape_cast %179 : vector<1x2x2xf32> to vector<2x2xf32>
    %181 = vector.extract_strided_slice %180 {offsets = [0, 0], sizes = [2, 1], strides = [1, 1]} : vector<2x2xf32> to vector<2x1xf32>
    %182 = vector.extract_strided_slice %178 {offsets = [0, 0], sizes = [1, 256], strides = [1, 1]} : vector<2x256xf32> to vector<1x256xf32>
    %183 = vector.broadcast %181 : vector<2x1xf32> to vector<2x256xf32>
    %184 = vector.broadcast %182 : vector<1x256xf32> to vector<2x256xf32>
    %185 = arith.mulf %183, %184 : vector<2x256xf32>
    %186 = vector.extract_strided_slice %180 {offsets = [0, 1], sizes = [2, 1], strides = [1, 1]} : vector<2x2xf32> to vector<2x1xf32>
    %187 = vector.extract_strided_slice %178 {offsets = [1, 0], sizes = [1, 256], strides = [1, 1]} : vector<2x256xf32> to vector<1x256xf32>
    %188 = vector.broadcast %186 : vector<2x1xf32> to vector<2x256xf32>
    %189 = vector.broadcast %187 : vector<1x256xf32> to vector<2x256xf32>
    %190 = arith.mulf %188, %189 : vector<2x256xf32>
    %191 = arith.addf %185, %190 : vector<2x256xf32>
    %192 = arith.addf %166, %191 : vector<2x256xf32>
    %c7 = arith.constant 7 : index
    %c0_34 = arith.constant 0 : index
    %c0_35 = arith.constant 0 : index
    %193 = vector.load %arg6[%c7, %c0_34, %c0_35] : memref<9x2x2xf32, #tpu.memory_space<vmem>>, vector<1x2x2xf32>
    %194 = vector.shape_cast %193 : vector<1x2x2xf32> to vector<2x2xf32>
    %195 = vector.extract_strided_slice %194 {offsets = [0, 0], sizes = [2, 1], strides = [1, 1]} : vector<2x2xf32> to vector<2x1xf32>
    %196 = vector.extract_strided_slice %172 {offsets = [0, 0], sizes = [1, 256], strides = [1, 1]} : vector<2x256xf32> to vector<1x256xf32>
    %197 = vector.broadcast %195 : vector<2x1xf32> to vector<2x256xf32>
    %198 = vector.broadcast %196 : vector<1x256xf32> to vector<2x256xf32>
    %199 = arith.mulf %197, %198 : vector<2x256xf32>
    %200 = vector.extract_strided_slice %194 {offsets = [0, 1], sizes = [2, 1], strides = [1, 1]} : vector<2x2xf32> to vector<2x1xf32>
    %201 = vector.extract_strided_slice %172 {offsets = [1, 0], sizes = [1, 256], strides = [1, 1]} : vector<2x256xf32> to vector<1x256xf32>
    %202 = vector.broadcast %200 : vector<2x1xf32> to vector<2x256xf32>
    %203 = vector.broadcast %201 : vector<1x256xf32> to vector<2x256xf32>
    %204 = arith.mulf %202, %203 : vector<2x256xf32>
    %205 = arith.addf %199, %204 : vector<2x256xf32>
    %206 = arith.addf %192, %205 : vector<2x256xf32>
    %c1_i32_36 = arith.constant 1 : i32
    %207 = tpu.dynamic_rotate %172 by %c1_i32_36 dim 1 : vector<2x256xf32>, i32 -> vector<2x256xf32>
    %208 = vector.broadcast %17 : vector<1x256xf32> to vector<2x256xf32>
    %209 = arith.mulf %207, %208 : vector<2x256xf32>
    %210 = vector.broadcast %11 : vector<1x256xf32> to vector<2x256xf32>
    %211 = arith.mulf %172, %210 : vector<2x256xf32>
    %212 = arith.addf %209, %211 : vector<2x256xf32>
    %c8 = arith.constant 8 : index
    %c0_37 = arith.constant 0 : index
    %c0_38 = arith.constant 0 : index
    %213 = vector.load %arg6[%c8, %c0_37, %c0_38] : memref<9x2x2xf32, #tpu.memory_space<vmem>>, vector<1x2x2xf32>
    %214 = vector.shape_cast %213 : vector<1x2x2xf32> to vector<2x2xf32>
    %215 = vector.extract_strided_slice %214 {offsets = [0, 0], sizes = [2, 1], strides = [1, 1]} : vector<2x2xf32> to vector<2x1xf32>
    %216 = vector.extract_strided_slice %212 {offsets = [0, 0], sizes = [1, 256], strides = [1, 1]} : vector<2x256xf32> to vector<1x256xf32>
    %217 = vector.broadcast %215 : vector<2x1xf32> to vector<2x256xf32>
    %218 = vector.broadcast %216 : vector<1x256xf32> to vector<2x256xf32>
    %219 = arith.mulf %217, %218 : vector<2x256xf32>
    %220 = vector.extract_strided_slice %214 {offsets = [0, 1], sizes = [2, 1], strides = [1, 1]} : vector<2x2xf32> to vector<2x1xf32>
    %221 = vector.extract_strided_slice %212 {offsets = [1, 0], sizes = [1, 256], strides = [1, 1]} : vector<2x256xf32> to vector<1x256xf32>
    %222 = vector.broadcast %220 : vector<2x1xf32> to vector<2x256xf32>
    %223 = vector.broadcast %221 : vector<1x256xf32> to vector<2x256xf32>
    %224 = arith.mulf %222, %223 : vector<2x256xf32>
    %225 = arith.addf %219, %224 : vector<2x256xf32>
    %226 = arith.addf %206, %225 : vector<2x256xf32>
    %c0_39 = arith.constant 0 : index
    %c0_40 = arith.constant 0 : index
    %227 = vector.load %arg7[%c0_39, %c0_40] : memref<2x1xf32, #tpu.memory_space<vmem>>, vector<2x1xf32>
    %228 = vector.broadcast %2 : vector<1x256xf32> to vector<2x256xf32>
    %229 = vector.broadcast %227 : vector<2x1xf32> to vector<2x256xf32>
    %230 = arith.mulf %228, %229 : vector<2x256xf32>
    %231 = arith.addf %226, %230 : vector<2x256xf32>
    %232 = vector.broadcast %2 : vector<1x256xf32> to vector<2x256xf32>
    %233 = arith.mulf %231, %232 : vector<2x256xf32>
    %cst_41 = arith.constant 0.000000e+00 : f32
    %234 = vector.broadcast %cst_41 : f32 to vector<2x256xf32>
    %235 = arith.cmpf oge, %233, %234 : vector<2x256xf32>
    %cst_42 = arith.constant 0.00999999977 : f32
    %236 = vector.broadcast %cst_42 : f32 to vector<2x256xf32>
    %237 = arith.mulf %236, %233 : vector<2x256xf32>
    %238 = arith.select %235, %233, %237 : vector<2x256xi1>, vector<2x256xf32>
    %c0_43 = arith.constant 0 : index
    %c0_44 = arith.constant 0 : index
    %239 = vector.load %arg8[%c0_43, %c0_44] : memref<8x2xf32, #tpu.memory_space<vmem>>, vector<8x2xf32>
    %240 = vector.extract_strided_slice %239 {offsets = [0, 0], sizes = [8, 1], strides = [1, 1]} : vector<8x2xf32> to vector<8x1xf32>
    %241 = vector.extract_strided_slice %238 {offsets = [0, 0], sizes = [1, 256], strides = [1, 1]} : vector<2x256xf32> to vector<1x256xf32>
    %242 = vector.broadcast %240 : vector<8x1xf32> to vector<8x256xf32>
    %243 = vector.broadcast %241 : vector<1x256xf32> to vector<8x256xf32>
    %244 = arith.mulf %242, %243 : vector<8x256xf32>
    %245 = vector.extract_strided_slice %239 {offsets = [0, 1], sizes = [8, 1], strides = [1, 1]} : vector<8x2xf32> to vector<8x1xf32>
    %246 = vector.extract_strided_slice %238 {offsets = [1, 0], sizes = [1, 256], strides = [1, 1]} : vector<2x256xf32> to vector<1x256xf32>
    %247 = vector.broadcast %245 : vector<8x1xf32> to vector<8x256xf32>
    %248 = vector.broadcast %246 : vector<1x256xf32> to vector<8x256xf32>
    %249 = arith.mulf %247, %248 : vector<8x256xf32>
    %250 = arith.addf %244, %249 : vector<8x256xf32>
    %c0_45 = arith.constant 0 : index
    %c0_46 = arith.constant 0 : index
    %251 = vector.load %arg9[%c0_45, %c0_46] : memref<8x4xf32, #tpu.memory_space<vmem>>, vector<8x4xf32>
    %252 = vector.extract_strided_slice %251 {offsets = [0, 0], sizes = [8, 1], strides = [1, 1]} : vector<8x4xf32> to vector<8x1xf32>
    %253 = vector.extract_strided_slice %6 {offsets = [0, 0], sizes = [1, 256], strides = [1, 1]} : vector<4x256xf32> to vector<1x256xf32>
    %254 = vector.broadcast %252 : vector<8x1xf32> to vector<8x256xf32>
    %255 = vector.broadcast %253 : vector<1x256xf32> to vector<8x256xf32>
    %256 = arith.mulf %254, %255 : vector<8x256xf32>
    %257 = vector.extract_strided_slice %251 {offsets = [0, 1], sizes = [8, 1], strides = [1, 1]} : vector<8x4xf32> to vector<8x1xf32>
    %258 = vector.extract_strided_slice %6 {offsets = [1, 0], sizes = [1, 256], strides = [1, 1]} : vector<4x256xf32> to vector<1x256xf32>
    %259 = vector.broadcast %257 : vector<8x1xf32> to vector<8x256xf32>
    %260 = vector.broadcast %258 : vector<1x256xf32> to vector<8x256xf32>
    %261 = arith.mulf %259, %260 : vector<8x256xf32>
    %262 = arith.addf %256, %261 : vector<8x256xf32>
    %263 = vector.extract_strided_slice %251 {offsets = [0, 2], sizes = [8, 1], strides = [1, 1]} : vector<8x4xf32> to vector<8x1xf32>
    %264 = vector.extract_strided_slice %6 {offsets = [2, 0], sizes = [1, 256], strides = [1, 1]} : vector<4x256xf32> to vector<1x256xf32>
    %265 = vector.broadcast %263 : vector<8x1xf32> to vector<8x256xf32>
    %266 = vector.broadcast %264 : vector<1x256xf32> to vector<8x256xf32>
    %267 = arith.mulf %265, %266 : vector<8x256xf32>
    %268 = arith.addf %262, %267 : vector<8x256xf32>
    %269 = vector.extract_strided_slice %251 {offsets = [0, 3], sizes = [8, 1], strides = [1, 1]} : vector<8x4xf32> to vector<8x1xf32>
    %270 = vector.extract_strided_slice %6 {offsets = [3, 0], sizes = [1, 256], strides = [1, 1]} : vector<4x256xf32> to vector<1x256xf32>
    %271 = vector.broadcast %269 : vector<8x1xf32> to vector<8x256xf32>
    %272 = vector.broadcast %270 : vector<1x256xf32> to vector<8x256xf32>
    %273 = arith.mulf %271, %272 : vector<8x256xf32>
    %274 = arith.addf %268, %273 : vector<8x256xf32>
    %275 = arith.addf %250, %274 : vector<8x256xf32>
    %c0_47 = arith.constant 0 : index
    %c0_48 = arith.constant 0 : index
    %276 = vector.load %arg10[%c0_47, %c0_48] : memref<8x1xf32, #tpu.memory_space<vmem>>, vector<8x1xf32>
    %277 = vector.broadcast %2 : vector<1x256xf32> to vector<8x256xf32>
    %278 = vector.broadcast %276 : vector<8x1xf32> to vector<8x256xf32>
    %279 = arith.mulf %277, %278 : vector<8x256xf32>
    %280 = arith.addf %275, %279 : vector<8x256xf32>
    %cst_49 = arith.constant 0.000000e+00 : f32
    %281 = vector.broadcast %cst_49 : f32 to vector<8x256xf32>
    %282 = arith.cmpf oge, %280, %281 : vector<8x256xf32>
    %cst_50 = arith.constant 0.00999999977 : f32
    %283 = vector.broadcast %cst_50 : f32 to vector<8x256xf32>
    %284 = arith.mulf %283, %280 : vector<8x256xf32>
    %285 = arith.select %282, %280, %284 : vector<8x256xi1>, vector<8x256xf32>
    %c0_51 = arith.constant 0 : index
    %c0_52 = arith.constant 0 : index
    %c0_53 = arith.constant 0 : index
    %286 = vector.load %arg11[%c0_51, %c0_52, %c0_53] : memref<1x8x256xf32, #tpu.memory_space<vmem>>, vector<1x8x256xf32>
    %287 = vector.shape_cast %286 : vector<1x8x256xf32> to vector<8x256xf32>
    %288 = vector.shape_cast %285 : vector<8x256xf32> to vector<1x8x256xf32>
    tpu.vector_store %arg11[%c0_51, %c0_52, %c0_53], %288 {strides = array<i32>} : memref<1x8x256xf32, #tpu.memory_space<vmem>>, vector<1x8x256xf32>,
    return
  }
  func.func @transform_0(%arg0: i32) -> (i32, i32, i32) {
    %c0_i32 = arith.constant 0 : i32
    %c0_i32_0 = arith.constant 0 : i32
    %c0_i32_1 = arith.constant 0 : i32
    return %arg0, %c0_i32, %c0_i32_0 : i32, i32, i32
  }
  func.func @transform_1(%arg0: i32) -> (i32, i32, i32) {
    %c0_i32 = arith.constant 0 : i32
    %c0_i32_0 = arith.constant 0 : i32
    %c0_i32_1 = arith.constant 0 : i32
    return %arg0, %c0_i32, %c0_i32_0 : i32, i32, i32
  }
  func.func @transform_2(%arg0: i32) -> (i32, i32) {
    %c0_i32 = arith.constant 0 : i32
    %c0_i32_0 = arith.constant 0 : i32
    %c0_i32_1 = arith.constant 0 : i32
    return %c0_i32, %c0_i32_0 : i32, i32
  }
  func.func @transform_3(%arg0: i32) -> (i32, i32) {
    %c0_i32 = arith.constant 0 : i32
    %c0_i32_0 = arith.constant 0 : i32
    %c0_i32_1 = arith.constant 0 : i32
    return %c0_i32, %c0_i32_0 : i32, i32
  }
  func.func @transform_4(%arg0: i32) -> (i32, i32) {
    %c0_i32 = arith.constant 0 : i32
    %c0_i32_0 = arith.constant 0 : i32
    %c0_i32_1 = arith.constant 0 : i32
    return %c0_i32, %c0_i32_0 : i32, i32
  }
  func.func @transform_5(%arg0: i32) -> (i32, i32, i32) {
    %c0_i32 = arith.constant 0 : i32
    %c0_i32_0 = arith.constant 0 : i32
    %c0_i32_1 = arith.constant 0 : i32
    %c0_i32_2 = arith.constant 0 : i32
    return %c0_i32, %c0_i32_0, %c0_i32_1 : i32, i32, i32
  }
  func.func @transform_6(%arg0: i32) -> (i32, i32) {
    %c0_i32 = arith.constant 0 : i32
    %c0_i32_0 = arith.constant 0 : i32
    %c0_i32_1 = arith.constant 0 : i32
    return %c0_i32, %c0_i32_0 : i32, i32
  }
  func.func @transform_7(%arg0: i32) -> (i32, i32) {
    %c0_i32 = arith.constant 0 : i32
    %c0_i32_0 = arith.constant 0 : i32
    %c0_i32_1 = arith.constant 0 : i32
    return %c0_i32, %c0_i32_0 : i32, i32
  }
  func.func @transform_8(%arg0: i32) -> (i32, i32) {
    %c0_i32 = arith.constant 0 : i32
    %c0_i32_0 = arith.constant 0 : i32
    %c0_i32_1 = arith.constant 0 : i32
    return %c0_i32, %c0_i32_0 : i32, i32
  }
  func.func @transform_9(%arg0: i32) -> (i32, i32) {
    %c0_i32 = arith.constant 0 : i32
    %c0_i32_0 = arith.constant 0 : i32
    %c0_i32_1 = arith.constant 0 : i32
    return %c0_i32, %c0_i32_0 : i32, i32
  }
  func.func @transform_10(%arg0: i32) -> (i32, i32, i32) {
    %c0_i32 = arith.constant 0 : i32
    %c0_i32_0 = arith.constant 0 : i32
    %c0_i32_1 = arith.constant 0 : i32
    return %arg0, %c0_i32, %c0_i32_0 : i32, i32, i32
  }
}

</mosaic_0001>

<llo_original>
// kernel: tpu_custom_call.1
$region0: #{tpu_custom_call.1}
  #allocation0 [shape = 'u32[]', space=smem, size = 0x4, offset = 0x4, fixed_abs, tag = 'smem constant byte address 0x4 - core index']
  #allocation1 [shape = 'u32[144,128]{1,0:T(1,128)}', space=vmem, size = 0x12000, scoped, tag = 'internal scratch']
  %s0 = inlined_call_operand.vmem [shape: f32[2,4,256], index: 0, kind: input, shape index: {}]
  %s1 = inlined_call_operand.vmem [shape: s8[2,1,256], index: 1, kind: input, shape index: {}]
  %s2 = inlined_call_operand.vmem [shape: f32[4,256], index: 2, kind: input, shape index: {}]
  %s3 = inlined_call_operand.vmem [shape: f32[2,4], index: 3, kind: input, shape index: {}]
  %s4 = inlined_call_operand.vmem [shape: f32[2,1], index: 4, kind: input, shape index: {}]
  %s5 = inlined_call_operand.vmem [shape: f32[9,2,2], index: 5, kind: input, shape index: {}]
  %s6 = inlined_call_operand.vmem [shape: f32[2,1], index: 6, kind: input, shape index: {}]
  %s7 = inlined_call_operand.vmem [shape: f32[8,2], index: 7, kind: input, shape index: {}]
  %s8 = inlined_call_operand.vmem [shape: f32[8,4], index: 8, kind: input, shape index: {}]
  %s9 = inlined_call_operand.vmem [shape: f32[8,1], index: 9, kind: input, shape index: {}]
  %s10 = inlined_call_operand.hbm [shape: f32[2,8,256], index: 10, kind: output, shape index: {}]
  %s11 = sld [smem:[#allocation0]]
  $region73: #{tpu_custom_call.1} parent=0
    _
  %s13 = ssub.s32 1, %s11
  %s14 = scalar_select 0, %s13, %s11
  $region1: #{tpu_custom_call.1} parent=0
    #allocation2 [shape = 'u8[16384]{0}', space=vmem, size = 0x4000, scoped, tag = 'output window, operand 0']
    #allocation3 [shape = 's32[2]{0}', space=sflag, size = 0x8, scoped, tag = 'scoped memory for tpu_custom_call.1']
    %15 = vsyncpa [#allocation3], 0
    %s16 = scalar_lea.sflag [#allocation3], 1
    %17 = vsyncpa %s16, 0
    loop: start=0, step=1, limit=4
    $region2: #{tpu_custom_call.1} parent=1 // loop_pre_header
      _
    $region3: #{tpu_custom_call.1} parent=1 // loop_header
      %s19 = sphi 0, %s23
      %p20 = scmp.ge.s32.totalorder %s19, 4
      %s29 = sphi 0, %s31
      %s32 = sphi 0, %s29
      %s33 = sphi 0, %s32
      %s49 = sphi 0, %s33
      %s55 = sphi 0, %s57
      %s58 = sphi 0, %s55
      %s59 = sphi 0, %s58
      %s75 = sphi 0, %s59
      %s79 = sphi 0, %s79
      %s81 = sphi 0, %s79
      %s82 = sphi 0, %s81
      %s96 = sphi 0, %s82
      %s100 = sphi 0, %s100
      %s102 = sphi 0, %s100
      %s103 = sphi 0, %s102
      %s117 = sphi 0, %s103
      %s121 = sphi 0, %s121
      %s123 = sphi 0, %s121
      %s124 = sphi 0, %s123
      %s138 = sphi 0, %s124
      %s142 = sphi 0, %s142
      %s144 = sphi 0, %s142
      %s145 = sphi 0, %s144
      %s159 = sphi 0, %s145
      %s163 = sphi 0, %s163
      %s165 = sphi 0, %s163
      %s166 = sphi 0, %s165
      %s180 = sphi 0, %s166
      %s184 = sphi 0, %s184
      %s186 = sphi 0, %s184
      %s187 = sphi 0, %s186
      %s201 = sphi 0, %s187
      %s205 = sphi 0, %s205
      %s207 = sphi 0, %s205
      %s208 = sphi 0, %s207
      %s222 = sphi 0, %s208
      %s226 = sphi 0, %s226
      %s228 = sphi 0, %s226
      %s229 = sphi 0, %s228
      %s243 = sphi 0, %s229
      %s249 = sphi 0, %s251
      %s252 = sphi 0, %s249
      %s253 = sphi 0, %s252
      %s269 = sphi 0, %s253
    $region4: #{tpu_custom_call.1} parent=1 // loop_header_branch
      %22 = sbr.rel (%p20) target = $region8
    $region5: #{tpu_custom_call.1} parent=1 // loop_body
      %s24 = ssub.s32 %s19, 1
      %s25 = ssub.s32 %s19, 2
      %s26 = sadd.s32 %s19, 1
      %s27 = ssub.s32 %s19, %s26
      %p28 = scmp.eq.s32.totalorder %s27, 0
      %s30 = sadd.s32 %s29, 1
      %s31 = scalar_select %p28, %s29, %s30
      %p34 = pneg %p28
      %p35 = scmp.eq.s32.totalorder %s19, 1
      %p36 = por %p34, %p35
      %p37 = scmp.ne.s32.totalorder %s29, %s32
      %p38 = scmp.eq.s32.totalorder %s19, 0
      %p39 = por %p37, %p38
      %p40 = scmp.ne.s32.totalorder %s29, %s32
      %p41 = scmp.eq.s32.totalorder %s24, 1
      %p42 = por %p40, %p41
      %p43 = scmp.ne.s32.totalorder %s32, %s33
      %p44 = scmp.eq.s32.totalorder %s24, 0
      %p45 = por %p43, %p44
      %p46 = scmp.ne.s32.totalorder %s32, %s33
      %p47 = scmp.eq.s32.totalorder %s25, 1
      %p48 = por %p46, %p47
      %p50 = scmp.ne.s32.totalorder %s33, %s49
      %p51 = scmp.eq.s32.totalorder %s25, 0
      %p52 = por %p50, %p51
      %s53 = ssub.s32 %s19, %s26
      %p54 = scmp.eq.s32.totalorder %s53, 0
      %s56 = sadd.s32 %s55, 1
      %s57 = scalar_select %p54, %s55, %s56
      %p60 = pneg %p54
      %p61 = scmp.eq.s32.totalorder %s19, 1
      %p62 = por %p60, %p61
      %p63 = scmp.ne.s32.totalorder %s55, %s58
      %p64 = scmp.eq.s32.totalorder %s19, 0
      %p65 = por %p63, %p64
      %p66 = scmp.ne.s32.totalorder %s55, %s58
      %p67 = scmp.eq.s32.totalorder %s24, 1
      %p68 = por %p66, %p67
      %p69 = scmp.ne.s32.totalorder %s58, %s59
      %p70 = scmp.eq.s32.totalorder %s24, 0
      %p71 = por %p69, %p70
      %p72 = scmp.ne.s32.totalorder %s58, %s59
      %p73 = scmp.eq.s32.totalorder %s25, 1
      %p74 = por %p72, %p73
      %p76 = scmp.ne.s32.totalorder %s59, %s75
      %p77 = scmp.eq.s32.totalorder %s25, 0
      %p78 = por %p76, %p77
      %s80 = sadd.s32 %s79, 1
      %p83 = scmp.eq.s32.totalorder %s19, 1
      %p84 = scmp.ne.s32.totalorder %s79, %s81
      %p85 = scmp.eq.s32.totalorder %s19, 0
      %p86 = por %p84, %p85
      %p87 = scmp.ne.s32.totalorder %s79, %s81
      %p88 = scmp.eq.s32.totalorder %s24, 1
      %p89 = por %p87, %p88
      %p90 = scmp.ne.s32.totalorder %s81, %s82
      %p91 = scmp.eq.s32.totalorder %s24, 0
      %p92 = por %p90, %p91
      %p93 = scmp.ne.s32.totalorder %s81, %s82
      %p94 = scmp.eq.s32.totalorder %s25, 1
      %p95 = por %p93, %p94
      %p97 = scmp.ne.s32.totalorder %s82, %s96
      %p98 = scmp.eq.s32.totalorder %s25, 0
      %p99 = por %p97, %p98
      %s101 = sadd.s32 %s100, 1
      %p104 = scmp.eq.s32.totalorder %s19, 1
      %p105 = scmp.ne.s32.totalorder %s100, %s102
      %p106 = scmp.eq.s32.totalorder %s19, 0
      %p107 = por %p105, %p106
      %p108 = scmp.ne.s32.totalorder %s100, %s102
      %p109 = scmp.eq.s32.totalorder %s24, 1
      %p110 = por %p108, %p109
      %p111 = scmp.ne.s32.totalorder %s102, %s103
      %p112 = scmp.eq.s32.totalorder %s24, 0
      %p113 = por %p111, %p112
      %p114 = scmp.ne.s32.totalorder %s102, %s103
      %p115 = scmp.eq.s32.totalorder %s25, 1
      %p116 = por %p114, %p115
      %p118 = scmp.ne.s32.totalorder %s103, %s117
      %p119 = scmp.eq.s32.totalorder %s25, 0
      %p120 = por %p118, %p119
      %s122 = sadd.s32 %s121, 1
      %p125 = scmp.eq.s32.totalorder %s19, 1
      %p126 = scmp.ne.s32.totalorder %s121, %s123
      %p127 = scmp.eq.s32.totalorder %s19, 0
      %p128 = por %p126, %p127
      %p129 = scmp.ne.s32.totalorder %s121, %s123
      %p130 = scmp.eq.s32.totalorder %s24, 1
      %p131 = por %p129, %p130
      %p132 = scmp.ne.s32.totalorder %s123, %s124
      %p133 = scmp.eq.s32.totalorder %s24, 0
      %p134 = por %p132, %p133
      %p135 = scmp.ne.s32.totalorder %s123, %s124
      %p136 = scmp.eq.s32.totalorder %s25, 1
      %p137 = por %p135, %p136
      %p139 = scmp.ne.s32.totalorder %s124, %s138
      %p140 = scmp.eq.s32.totalorder %s25, 0
      %p141 = por %p139, %p140
      %s143 = sadd.s32 %s142, 1
      %p146 = scmp.eq.s32.totalorder %s19, 1
      %p147 = scmp.ne.s32.totalorder %s142, %s144
      %p148 = scmp.eq.s32.totalorder %s19, 0
      %p149 = por %p147, %p148
      %p150 = scmp.ne.s32.totalorder %s142, %s144
      %p151 = scmp.eq.s32.totalorder %s24, 1
      %p152 = por %p150, %p151
      %p153 = scmp.ne.s32.totalorder %s144, %s145
      %p154 = scmp.eq.s32.totalorder %s24, 0
      %p155 = por %p153, %p154
      %p156 = scmp.ne.s32.totalorder %s144, %s145
      %p157 = scmp.eq.s32.totalorder %s25, 1
      %p158 = por %p156, %p157
      %p160 = scmp.ne.s32.totalorder %s145, %s159
      %p161 = scmp.eq.s32.totalorder %s25, 0
      %p162 = por %p160, %p161
      %s164 = sadd.s32 %s163, 1
      %p167 = scmp.eq.s32.totalorder %s19, 1
      %p168 = scmp.ne.s32.totalorder %s163, %s165
      %p169 = scmp.eq.s32.totalorder %s19, 0
      %p170 = por %p168, %p169
      %p171 = scmp.ne.s32.totalorder %s163, %s165
      %p172 = scmp.eq.s32.totalorder %s24, 1
      %p173 = por %p171, %p172
      %p174 = scmp.ne.s32.totalorder %s165, %s166
      %p175 = scmp.eq.s32.totalorder %s24, 0
      %p176 = por %p174, %p175
      %p177 = scmp.ne.s32.totalorder %s165, %s166
      %p178 = scmp.eq.s32.totalorder %s25, 1
      %p179 = por %p177, %p178
      %p181 = scmp.ne.s32.totalorder %s166, %s180
      %p182 = scmp.eq.s32.totalorder %s25, 0
      %p183 = por %p181, %p182
      %s185 = sadd.s32 %s184, 1
      %p188 = scmp.eq.s32.totalorder %s19, 1
      %p189 = scmp.ne.s32.totalorder %s184, %s186
      %p190 = scmp.eq.s32.totalorder %s19, 0
      %p191 = por %p189, %p190
      %p192 = scmp.ne.s32.totalorder %s184, %s186
      %p193 = scmp.eq.s32.totalorder %s24, 1
      %p194 = por %p192, %p193
      %p195 = scmp.ne.s32.totalorder %s186, %s187
      %p196 = scmp.eq.s32.totalorder %s24, 0
      %p197 = por %p195, %p196
      %p198 = scmp.ne.s32.totalorder %s186, %s187
      %p199 = scmp.eq.s32.totalorder %s25, 1
      %p200 = por %p198, %p199
      %p202 = scmp.ne.s32.totalorder %s187, %s201
      %p203 = scmp.eq.s32.totalorder %s25, 0
      %p204 = por %p202, %p203
      %s206 = sadd.s32 %s205, 1
      %p209 = scmp.eq.s32.totalorder %s19, 1
      %p210 = scmp.ne.s32.totalorder %s205, %s207
      %p211 = scmp.eq.s32.totalorder %s19, 0
      %p212 = por %p210, %p211
      %p213 = scmp.ne.s32.totalorder %s205, %s207
      %p214 = scmp.eq.s32.totalorder %s24, 1
      %p215 = por %p213, %p214
      %p216 = scmp.ne.s32.totalorder %s207, %s208
      %p217 = scmp.eq.s32.totalorder %s24, 0
      %p218 = por %p216, %p217
      %p219 = scmp.ne.s32.totalorder %s207, %s208
      %p220 = scmp.eq.s32.totalorder %s25, 1
      %p221 = por %p219, %p220
      %p223 = scmp.ne.s32.totalorder %s208, %s222
      %p224 = scmp.eq.s32.totalorder %s25, 0
      %p225 = por %p223, %p224
      %s227 = sadd.s32 %s226, 1
      %p230 = scmp.eq.s32.totalorder %s19, 1
      %p231 = scmp.ne.s32.totalorder %s226, %s228
      %p232 = scmp.eq.s32.totalorder %s19, 0
      %p233 = por %p231, %p232
      %p234 = scmp.ne.s32.totalorder %s226, %s228
      %p235 = scmp.eq.s32.totalorder %s24, 1
      %p236 = por %p234, %p235
      %p237 = scmp.ne.s32.totalorder %s228, %s229
      %p238 = scmp.eq.s32.totalorder %s24, 0
      %p239 = por %p237, %p238
      %p240 = scmp.ne.s32.totalorder %s228, %s229
      %p241 = scmp.eq.s32.totalorder %s25, 1
      %p242 = por %p240, %p241
      %p244 = scmp.ne.s32.totalorder %s229, %s243
      %p245 = scmp.eq.s32.totalorder %s25, 0
      %p246 = por %p244, %p245
      %s247 = ssub.s32 %s19, %s26
      %p248 = scmp.eq.s32.totalorder %s247, 0
      %s250 = sadd.s32 %s249, 1
      %s251 = scalar_select %p248, %s249, %s250
      %p254 = pneg %p248
      %p255 = scmp.eq.s32.totalorder %s19, 1
      %p256 = por %p254, %p255
      %p257 = scmp.ne.s32.totalorder %s249, %s252
      %p258 = scmp.eq.s32.totalorder %s19, 0
      %p259 = por %p257, %p258
      %p260 = scmp.ne.s32.totalorder %s249, %s252
      %p261 = scmp.eq.s32.totalorder %s24, 1
      %p262 = por %p260, %p261
      %p263 = scmp.ne.s32.totalorder %s252, %s253
      %p264 = scmp.eq.s32.totalorder %s24, 0
      %p265 = por %p263, %p264
      %p266 = scmp.ne.s32.totalorder %s252, %s253
      %p267 = scmp.eq.s32.totalorder %s25, 1
      %p268 = por %p266, %p267
      %p270 = scmp.ne.s32.totalorder %s253, %s269
      %p271 = scmp.eq.s32.totalorder %s25, 0
      %p272 = por %p270, %p271
      %p273 = scmp.le.s32.totalorder 1, %s19
      %p274 = scmp.lt.s32.totalorder %s19, 3
      %p275 = pnand %p273, %p274
      %p276 = pneg %p275
      // Predicated region
      $region9: #{tpu_custom_call.1} parent=5 // pred_check
        _
      $region10: #{tpu_custom_call.1} parent=5 // pred_check_branch
        %278 = sbr.rel (%p275) target = $region12
      $region11: #{tpu_custom_call.1} parent=5 // pred_region
        %s279 = ssub.s32 %s19, 1
        // Predicated region
        $region13: #{tpu_custom_call.1} parent=11 // pred_check
          %p280 = pneg %p92
        $region14: #{tpu_custom_call.1} parent=11 // pred_check_branch
          %282 = sbr.rel (%p280) target = $region16
        $region15: #{tpu_custom_call.1} parent=11 // pred_region
          _
        $region16: #{tpu_custom_call.1} parent=11 // pred_fallthru
          _
        // Predicated region
        $region17: #{tpu_custom_call.1} parent=11 // pred_check
          %p283 = pneg %p113
        $region18: #{tpu_custom_call.1} parent=11 // pred_check_branch
          %285 = sbr.rel (%p283) target = $region20
        $region19: #{tpu_custom_call.1} parent=11 // pred_region
          _
        $region20: #{tpu_custom_call.1} parent=11 // pred_fallthru
          _
        // Predicated region
        $region21: #{tpu_custom_call.1} parent=11 // pred_check
          %p286 = pneg %p134
        $region22: #{tpu_custom_call.1} parent=11 // pred_check_branch
          %288 = sbr.rel (%p286) target = $region24
        $region23: #{tpu_custom_call.1} parent=11 // pred_region
          _
        $region24: #{tpu_custom_call.1} parent=11 // pred_fallthru
          _
        // Predicated region
        $region25: #{tpu_custom_call.1} parent=11 // pred_check
          %p289 = pneg %p155
        $region26: #{tpu_custom_call.1} parent=11 // pred_check_branch
          %291 = sbr.rel (%p289) target = $region28
        $region27: #{tpu_custom_call.1} parent=11 // pred_region
          _
        $region28: #{tpu_custom_call.1} parent=11 // pred_fallthru
          _
        // Predicated region
        $region29: #{tpu_custom_call.1} parent=11 // pred_check
          %p292 = pneg %p176
        $region30: #{tpu_custom_call.1} parent=11 // pred_check_branch
          %294 = sbr.rel (%p292) target = $region32
        $region31: #{tpu_custom_call.1} parent=11 // pred_region
          _
        $region32: #{tpu_custom_call.1} parent=11 // pred_fallthru
          _
        // Predicated region
        $region33: #{tpu_custom_call.1} parent=11 // pred_check
          %p295 = pneg %p197
        $region34: #{tpu_custom_call.1} parent=11 // pred_check_branch
          %297 = sbr.rel (%p295) target = $region36
        $region35: #{tpu_custom_call.1} parent=11 // pred_region
          _
        $region36: #{tpu_custom_call.1} parent=11 // pred_fallthru
          _
        // Predicated region
        $region37: #{tpu_custom_call.1} parent=11 // pred_check
          %p298 = pneg %p218
        $region38: #{tpu_custom_call.1} parent=11 // pred_check_branch
          %300 = sbr.rel (%p298) target = $region40
        $region39: #{tpu_custom_call.1} parent=11 // pred_region
          _
        $region40: #{tpu_custom_call.1} parent=11 // pred_fallthru
          _
        // Predicated region
        $region41: #{tpu_custom_call.1} parent=11 // pred_check
          %p301 = pneg %p239
        $region42: #{tpu_custom_call.1} parent=11 // pred_check_branch
          %303 = sbr.rel (%p301) target = $region44
        $region43: #{tpu_custom_call.1} parent=11 // pred_region
          _
        $region44: #{tpu_custom_call.1} parent=11 // pred_fallthru
          _
      $region12: #{tpu_custom_call.1} parent=5 // pred_fallthru
        _
      %p304 = scmp.lt.s32.totalorder %s19, 2
      // Predicated region
      $region45: #{tpu_custom_call.1} parent=5 // pred_check
        %p305 = pneg %p304
      $region46: #{tpu_custom_call.1} parent=5 // pred_check_branch
        %307 = sbr.rel (%p305) target = $region48
      $region47: #{tpu_custom_call.1} parent=5 // pred_region
        // Predicated region
        $region49: #{tpu_custom_call.1} parent=47 // pred_check
          %p308 = pneg %p39
        $region50: #{tpu_custom_call.1} parent=47 // pred_check_branch
          %310 = sbr.rel (%p308) target = $region52
        $region51: #{tpu_custom_call.1} parent=47 // pred_region
          %p311 = scmp.lt.s32.totalorder %s19, 1
          %s312 = scalar_select %p311, %s19, 1
          %s313 = smul.addr %s312, 2
          %s314 = smul.addr %s313, 4
          %s315 = scalar_lea.vmem %s0, %s314
        $region52: #{tpu_custom_call.1} parent=47 // pred_fallthru
          _
        // Predicated region
        $region53: #{tpu_custom_call.1} parent=47 // pred_check
          %p316 = pneg %p65
        $region54: #{tpu_custom_call.1} parent=47 // pred_check_branch
          %318 = sbr.rel (%p316) target = $region56
        $region55: #{tpu_custom_call.1} parent=47 // pred_region
          %p319 = scmp.lt.s32.totalorder %s19, 1
          %s320 = scalar_select %p319, %s19, 1
          %s321 = smul.addr %s320, 2
          %s322 = scalar_lea.vmem %s1, %s321
        $region56: #{tpu_custom_call.1} parent=47 // pred_fallthru
          _
      $region48: #{tpu_custom_call.1} parent=5 // pred_fallthru
        _
      %p323 = scmp.le.s32.totalorder 1, %s19
      %p324 = scmp.lt.s32.totalorder %s19, 3
      %p325 = pnand %p323, %p324
      %p326 = pneg %p325
      // Predicated region
      $region57: #{tpu_custom_call.1} parent=5 // pred_check
        _
      $region58: #{tpu_custom_call.1} parent=5 // pred_check_branch
        %328 = sbr.rel (%p325) target = $region60
      $region59: #{tpu_custom_call.1} parent=5 // pred_region
        %s329 = ssub.s32 %s19, 1
        %p330 = scmp.lt.s32.totalorder %s24, 1
        %s331 = scalar_select %p330, %s24, 1
        %s332 = smul.addr %s331, 2
        %s333 = smul.addr %s332, 4
        %s334 = scalar_lea.vmem %s0, %s333
        %p335 = pneg %p45
        %p336 = pneg %p42
        %p337 = scmp.lt.s32.totalorder %s24, 1
        %s338 = scalar_select %p337, %s24, 1
        %s339 = smul.addr %s338, 2
        %s340 = scalar_lea.vmem %s1, %s339
        %p341 = pneg %p71
        %p342 = pneg %p68
        %p343 = pneg %p92
        %p344 = pneg %p89
        %p345 = pneg %p113
        %p346 = pneg %p110
        %p347 = pneg %p134
        %p348 = pneg %p131
        %p349 = pneg %p155
        %p350 = pneg %p152
        %p351 = pneg %p176
        %p352 = pneg %p173
        %p353 = pneg %p197
        %p354 = pneg %p194
        %p355 = pneg %p218
        %p356 = pneg %p215
        %p357 = pneg %p239
        %p358 = pneg %p236
        %p359 = pneg %p265
        %p360 = pneg %p262
        %s361 = sand.u32 %s252, 1
        %s362 = scalar_lea.sflag [#allocation3], %s361
        %s363 = sand.u32 %s252, 1
        %s364 = smul.addr %s363, 16
        %s365 = scalar_lea.vmem [#allocation2], %s364
        %p366 = scmp.lt.s32.totalorder %s24, 1
        %s367 = scalar_select %p366, %s24, 1
        %s368 = smul.addr %s367, 2
        %s369 = smul.addr %s368, 4
        %s370 = scalar_lea.vmem %s0, %s369
        %p371 = scmp.lt.s32.totalorder %s24, 1
        %s372 = scalar_select %p371, %s24, 1
        %s373 = smul.addr %s372, 2
        %s374 = scalar_lea.vmem %s1, %s373
        %v375 = vld [vmem:[%s374] sm:$0x3]
        %v376 = vunpack.c.0.s8 %v375
        %v377 = vcvt.s32.f32 %v376
        %v378 = vld [vmem:[%s370] sm:$0xff]
        %v380 = vlaneseq
        %v381 = vshrl.u32 %v380, 7
        %v382 = vsub.s32 0, %v381
        %v383 = vrot.slane %v377, %v382
        %v384 = vlaneseq
        %v385 = vshrl.u32 %v384, 7
        %v386 = vsub.s32 4, %v385
        %v387 = vrot.slane %v377, %v386
        %v390 = vlaneseq
        %v391 = vshrl.u32 %v390, 7
        %v392 = vsub.s32 0, %v391
        %v393 = vrot.slane %v383, %v392
        %v394 = vlaneseq
        %v395 = vshrl.u32 %v394, 7
        %v396 = vsub.s32 0, %v395
        %v397 = vrot.slane %v387, %v396
        %v400 = vcombine.low %v393, %v397
        %v402 = vmul.f32 %v378, %v400
        %v403 = vld [vmem:[%s2] sm:$0xff]
        %v404 = vsub.f32 1.0, %v403
        %v405 = vld [vmem:[%s3] sm:$0x3]
        %407 = vset.pattern.permute.xlu0 0
        %408 = vperm.xlu0 %407, %v405
        %v409 = vpop.permute.xlu0 %408
        %v412 = vlaneseq
        %v413 = vshrl.u32 %v412, 7
        %v414 = vsub.s32 0, %v413
        %v415 = vrot.slane %v402, %v414
        %v416 = vlaneseq
        %v417 = vshrl.u32 %v416, 7
        %v418 = vsub.s32 4, %v417
        %v419 = vrot.slane %v402, %v418
        %v422 = vlaneseq
        %v423 = vshrl.u32 %v422, 7
        %v424 = vsub.s32 0, %v423
        %v425 = vrot.slane %v415, %v424
        %v426 = vlaneseq
        %v427 = vshrl.u32 %v426, 7
        %v428 = vsub.s32 0, %v427
        %v429 = vrot.slane %v419, %v428
        %v430 = vmul.f32 %v409, %v425
        %v431 = vmul.f32 %v409, %v429
        %432 = vset.pattern.permute.xlu0 1
        %433 = vperm.xlu0 %432, %v405
        %v434 = vpop.permute.xlu0 %433
        %v436 = vlaneseq
        %v437 = vshrl.u32 %v436, 7
        %v438 = vsub.s32 1, %v437
        %v439 = vrot.slane %v402, %v438
        %v440 = vlaneseq
        %v441 = vshrl.u32 %v440, 7
        %v442 = vsub.s32 5, %v441
        %v443 = vrot.slane %v402, %v442
        %v446 = vlaneseq
        %v447 = vshrl.u32 %v446, 7
        %v448 = vsub.s32 1, %v447
        %v449 = vrot.slane %v439, %v448
        %v450 = vlaneseq
        %v451 = vshrl.u32 %v450, 7
        %v452 = vsub.s32 1, %v451
        %v453 = vrot.slane %v443, %v452
        %v454 = vmul.f32 %v434, %v449
        %v455 = vmul.f32 %v434, %v453
        %v456 = vadd.f32 %v430, %v454
        %v457 = vadd.f32 %v431, %v455
        %458 = vset.pattern.permute.xlu0 2
        %459 = vperm.xlu0 %458, %v405
        %v460 = vpop.permute.xlu0 %459
        %v462 = vlaneseq
        %v463 = vshrl.u32 %v462, 7
        %v464 = vsub.s32 2, %v463
        %v465 = vrot.slane %v402, %v464
        %v466 = vlaneseq
        %v467 = vshrl.u32 %v466, 7
        %v468 = vsub.s32 6, %v467
        %v469 = vrot.slane %v402, %v468
        %v472 = vlaneseq
        %v473 = vshrl.u32 %v472, 7
        %v474 = vsub.s32 2, %v473
        %v475 = vrot.slane %v465, %v474
        %v476 = vlaneseq
        %v477 = vshrl.u32 %v476, 7
        %v478 = vsub.s32 2, %v477
        %v479 = vrot.slane %v469, %v478
        %v480 = vmul.f32 %v460, %v475
        %v481 = vmul.f32 %v460, %v479
        %v482 = vadd.f32 %v456, %v480
        %v483 = vadd.f32 %v457, %v481
        %484 = vset.pattern.permute.xlu0 3
        %485 = vperm.xlu0 %484, %v405
        %v486 = vpop.permute.xlu0 %485
        %v488 = vlaneseq
        %v489 = vshrl.u32 %v488, 7
        %v490 = vsub.s32 3, %v489
        %v491 = vrot.slane %v402, %v490
        %v492 = vlaneseq
        %v493 = vshrl.u32 %v492, 7
        %v494 = vsub.s32 7, %v493
        %v495 = vrot.slane %v402, %v494
        %v498 = vlaneseq
        %v499 = vshrl.u32 %v498, 7
        %v500 = vsub.s32 3, %v499
        %v501 = vrot.slane %v491, %v500
        %v502 = vlaneseq
        %v503 = vshrl.u32 %v502, 7
        %v504 = vsub.s32 3, %v503
        %v505 = vrot.slane %v495, %v504
        %v506 = vmul.f32 %v486, %v501
        %v507 = vmul.f32 %v486, %v505
        %v508 = vadd.f32 %v482, %v506
        %v509 = vadd.f32 %v483, %v507
        %v510 = vld [vmem:[%s4] sm:$0x3]
        %512 = vset.pattern.permute.xlu0 0
        %513 = vperm.xlu0 %512, %v510
        %v514 = vpop.permute.xlu0 %513
        %v516 = vmul.f32 %v393, %v514
        %v517 = vmul.f32 %v397, %v514
        %v518 = vadd.f32 %v508, %v516
        %v519 = vadd.f32 %v509, %v517
        %vm520 = vcmp.ge.f32.partialorder %v518, 0.0
        %vm521 = vcmp.ge.f32.partialorder %v519, 0.0
        %v522 = vmul.f32 %v518, 0.01
        %v523 = vmul.f32 %v519, 0.01
        %v524 = vsel %vm520, %v518, %v522
        %v525 = vsel %vm521, %v519, %v523
        %526 = vrot.lane.b32.xlu0 %v524, 112
        %v527 = vpop.permute.xlu0 %526
        %528 = vrot.lane.b32.xlu0 %v525, 112
        %v529 = vpop.permute.xlu0 %528
        %v530 = vlaneseq
        %v531 = vand.u32 %v530, 127
        %vm532 = vcmp.lt.s32.totalorder %v531, 112
        %v533 = vsel %vm532, %v527, %v529
        %v534 = vsel %vm532, %v529, %v527
        %v536 = vlaneseq
        %v537 = vshrl.u32 %v536, 7
        %v538 = vsub.s32 1, %v537
        %v539 = vrot.slane %v404, %v538
        %v540 = vlaneseq
        %v541 = vshrl.u32 %v540, 7
        %v542 = vsub.s32 5, %v541
        %v543 = vrot.slane %v404, %v542
        %v546 = vlaneseq
        %v547 = vshrl.u32 %v546, 7
        %v548 = vsub.s32 1, %v547
        %v549 = vrot.slane %v539, %v548
        %v550 = vlaneseq
        %v551 = vshrl.u32 %v550, 7
        %v552 = vsub.s32 1, %v551
        %v553 = vrot.slane %v543, %v552
        %v554 = vmul.f32 %v533, %v549
        %v555 = vmul.f32 %v534, %v553
        %v557 = vlaneseq
        %v558 = vshrl.u32 %v557, 7
        %v559 = vsub.s32 0, %v558
        %v560 = vrot.slane %v403, %v559
        %v561 = vlaneseq
        %v562 = vshrl.u32 %v561, 7
        %v563 = vsub.s32 4, %v562
        %v564 = vrot.slane %v403, %v563
        %v567 = vlaneseq
        %v568 = vshrl.u32 %v567, 7
        %v569 = vsub.s32 0, %v568
        %v570 = vrot.slane %v560, %v569
        %v571 = vlaneseq
        %v572 = vshrl.u32 %v571, 7
        %v573 = vsub.s32 0, %v572
        %v574 = vrot.slane %v564, %v573
        %v575 = vmul.f32 %v524, %v570
        %v576 = vmul.f32 %v525, %v574
        %v577 = vadd.f32 %v554, %v575
        %v578 = vadd.f32 %v555, %v576
        %579 = vrot.lane.b32.xlu0 %v577, 127
        %v580 = vpop.permute.xlu0 %579
        %581 = vrot.lane.b32.xlu0 %v578, 127
        %v582 = vpop.permute.xlu0 %581
        %vm583 = vcmp.lt.s32.totalorder %v531, 127
        %v584 = vsel %vm583, %v580, %v582
        %v585 = vsel %vm583, %v582, %v580
        %v586 = vlaneseq
        %v587 = vshrl.u32 %v586, 7
        %v588 = vsub.s32 3, %v587
        %v589 = vrot.slane %v404, %v588
        %v590 = vlaneseq
        %v591 = vshrl.u32 %v590, 7
        %v592 = vsub.s32 7, %v591
        %v593 = vrot.slane %v404, %v592
        %v596 = vlaneseq
        %v597 = vshrl.u32 %v596, 7
        %v598 = vsub.s32 3, %v597
        %v599 = vrot.slane %v589, %v598
        %v600 = vlaneseq
        %v601 = vshrl.u32 %v600, 7
        %v602 = vsub.s32 3, %v601
        %v603 = vrot.slane %v593, %v602
        %v604 = vmul.f32 %v584, %v599
        %v605 = vmul.f32 %v585, %v603
        %v606 = vlaneseq
        %v607 = vshrl.u32 %v606, 7
        %v608 = vsub.s32 2, %v607
        %v609 = vrot.slane %v403, %v608
        %v610 = vlaneseq
        %v611 = vshrl.u32 %v610, 7
        %v612 = vsub.s32 6, %v611
        %v613 = vrot.slane %v403, %v612
        %v616 = vlaneseq
        %v617 = vshrl.u32 %v616, 7
        %v618 = vsub.s32 2, %v617
        %v619 = vrot.slane %v609, %v618
        %v620 = vlaneseq
        %v621 = vshrl.u32 %v620, 7
        %v622 = vsub.s32 2, %v621
        %v623 = vrot.slane %v613, %v622
        %v624 = vmul.f32 %v577, %v619
        %v625 = vmul.f32 %v578, %v623
        %v626 = vadd.f32 %v604, %v624
        %v627 = vadd.f32 %v605, %v625
        %v628 = vld [vmem:[%s5] sm:$0x3]
        %630 = vset.pattern.permute.xlu0 0
        %631 = vperm.xlu0 %630, %v628
        %v632 = vpop.permute.xlu0 %631
        %v634 = vlaneseq
        %v635 = vshrl.u32 %v634, 7
        %v636 = vsub.s32 0, %v635
        %v637 = vrot.slane %v626, %v636
        %v638 = vlaneseq
        %v639 = vshrl.u32 %v638, 7
        %v640 = vsub.s32 0, %v639
        %v641 = vrot.slane %v627, %v640
        %v642 = vmul.f32 %v632, %v637
        %v643 = vmul.f32 %v632, %v641
        %644 = vset.pattern.permute.xlu0 1
        %645 = vperm.xlu0 %644, %v628
        %v646 = vpop.permute.xlu0 %645
        %v648 = vlaneseq
        %v649 = vshrl.u32 %v648, 7
        %v650 = vsub.s32 1, %v649
        %v651 = vrot.slane %v626, %v650
        %v652 = vlaneseq
        %v653 = vshrl.u32 %v652, 7
        %v654 = vsub.s32 1, %v653
        %v655 = vrot.slane %v627, %v654
        %v656 = vmul.f32 %v646, %v651
        %v657 = vmul.f32 %v646, %v655
        %v658 = vadd.f32 %v642, %v656
        %v659 = vadd.f32 %v643, %v657
        %s660 = scalar_lea.vmem %s5, 2
        %v661 = vld [vmem:[%s660] sm:$0x3]
        %663 = vset.pattern.permute.xlu0 0
        %664 = vperm.xlu0 %663, %v661
        %v665 = vpop.permute.xlu0 %664
        %v667 = vlaneseq
        %v668 = vshrl.u32 %v667, 7
        %v669 = vsub.s32 0, %v668
        %v670 = vrot.slane %v577, %v669
        %v671 = vlaneseq
        %v672 = vshrl.u32 %v671, 7
        %v673 = vsub.s32 0, %v672
        %v674 = vrot.slane %v578, %v673
        %v675 = vmul.f32 %v665, %v670
        %v676 = vmul.f32 %v665, %v674
        %677 = vset.pattern.permute.xlu0 1
        %678 = vperm.xlu0 %677, %v661
        %v679 = vpop.permute.xlu0 %678
        %v681 = vlaneseq
        %v682 = vshrl.u32 %v681, 7
        %v683 = vsub.s32 1, %v682
        %v684 = vrot.slane %v577, %v683
        %v685 = vlaneseq
        %v686 = vshrl.u32 %v685, 7
        %v687 = vsub.s32 1, %v686
        %v688 = vrot.slane %v578, %v687
        %v689 = vmul.f32 %v679, %v684
        %v690 = vmul.f32 %v679, %v688
        %v691 = vadd.f32 %v675, %v689
        %v692 = vadd.f32 %v676, %v690
        %v693 = vadd.f32 %v658, %v691
        %v694 = vadd.f32 %v659, %v692
        %695 = vrot.lane.b32.xlu0 %v577, 1
        %v696 = vpop.permute.xlu0 %695
        %697 = vrot.lane.b32.xlu0 %v578, 1
        %v698 = vpop.permute.xlu0 %697
        %vm699 = vcmp.lt.s32.totalorder %v531, 1
        %v700 = vsel %vm699, %v696, %v698
        %v701 = vsel %vm699, %v698, %v696
        %v702 = vlaneseq
        %v703 = vshrl.u32 %v702, 7
        %v704 = vsub.s32 2, %v703
        %v705 = vrot.slane %v404, %v704
        %v706 = vlaneseq
        %v707 = vshrl.u32 %v706, 7
        %v708 = vsub.s32 6, %v707
        %v709 = vrot.slane %v404, %v708
        %v712 = vlaneseq
        %v713 = vshrl.u32 %v712, 7
        %v714 = vsub.s32 2, %v713
        %v715 = vrot.slane %v705, %v714
        %v716 = vlaneseq
        %v717 = vshrl.u32 %v716, 7
        %v718 = vsub.s32 2, %v717
        %v719 = vrot.slane %v709, %v718
        %v720 = vmul.f32 %v701, %v715
        %v721 = vmul.f32 %v700, %v719
        %v722 = vlaneseq
        %v723 = vshrl.u32 %v722, 7
        %v724 = vsub.s32 3, %v723
        %v725 = vrot.slane %v403, %v724
        %v726 = vlaneseq
        %v727 = vshrl.u32 %v726, 7
        %v728 = vsub.s32 7, %v727
        %v729 = vrot.slane %v403, %v728
        %v732 = vlaneseq
        %v733 = vshrl.u32 %v732, 7
        %v734 = vsub.s32 3, %v733
        %v735 = vrot.slane %v725, %v734
        %v736 = vlaneseq
        %v737 = vshrl.u32 %v736, 7
        %v738 = vsub.s32 3, %v737
        %v739 = vrot.slane %v729, %v738
        %v740 = vmul.f32 %v577, %v735
        %v741 = vmul.f32 %v578, %v739
        %v742 = vadd.f32 %v720, %v740
        %v743 = vadd.f32 %v721, %v741
        %s744 = scalar_lea.vmem %s5, 4
        %v745 = vld [vmem:[%s744] sm:$0x3]
        %747 = vset.pattern.permute.xlu0 0
        %748 = vperm.xlu0 %747, %v745
        %v749 = vpop.permute.xlu0 %748
        %v751 = vlaneseq
        %v752 = vshrl.u32 %v751, 7
        %v753 = vsub.s32 0, %v752
        %v754 = vrot.slane %v742, %v753
        %v755 = vlaneseq
        %v756 = vshrl.u32 %v755, 7
        %v757 = vsub.s32 0, %v756
        %v758 = vrot.slane %v743, %v757
        %v759 = vmul.f32 %v749, %v754
        %v760 = vmul.f32 %v749, %v758
        %761 = vset.pattern.permute.xlu0 1
        %762 = vperm.xlu0 %761, %v745
        %v763 = vpop.permute.xlu0 %762
        %v765 = vlaneseq
        %v766 = vshrl.u32 %v765, 7
        %v767 = vsub.s32 1, %v766
        %v768 = vrot.slane %v742, %v767
        %v769 = vlaneseq
        %v770 = vshrl.u32 %v769, 7
        %v771 = vsub.s32 1, %v770
        %v772 = vrot.slane %v743, %v771
        %v773 = vmul.f32 %v763, %v768
        %v774 = vmul.f32 %v763, %v772
        %v775 = vadd.f32 %v759, %v773
        %v776 = vadd.f32 %v760, %v774
        %v777 = vadd.f32 %v693, %v775
        %v778 = vadd.f32 %v694, %v776
        %779 = vrot.lane.b32.xlu0 %v524, 127
        %v780 = vpop.permute.xlu0 %779
        %781 = vrot.lane.b32.xlu0 %v525, 127
        %v782 = vpop.permute.xlu0 %781
        %v783 = vsel %vm583, %v780, %v782
        %v784 = vsel %vm583, %v782, %v780
        %v785 = vmul.f32 %v783, %v599
        %v786 = vmul.f32 %v784, %v603
        %v787 = vmul.f32 %v524, %v619
        %v788 = vmul.f32 %v525, %v623
        %v789 = vadd.f32 %v785, %v787
        %v790 = vadd.f32 %v786, %v788
        %s791 = scalar_lea.vmem %s5, 6
        %v792 = vld [vmem:[%s791] sm:$0x3]
        %794 = vset.pattern.permute.xlu0 0
        %795 = vperm.xlu0 %794, %v792
        %v796 = vpop.permute.xlu0 %795
        %v798 = vlaneseq
        %v799 = vshrl.u32 %v798, 7
        %v800 = vsub.s32 0, %v799
        %v801 = vrot.slane %v789, %v800
        %v802 = vlaneseq
        %v803 = vshrl.u32 %v802, 7
        %v804 = vsub.s32 0, %v803
        %v805 = vrot.slane %v790, %v804
        %v806 = vmul.f32 %v796, %v801
        %v807 = vmul.f32 %v796, %v805
        %808 = vset.pattern.permute.xlu0 1
        %809 = vperm.xlu0 %808, %v792
        %v810 = vpop.permute.xlu0 %809
        %v812 = vlaneseq
        %v813 = vshrl.u32 %v812, 7
        %v814 = vsub.s32 1, %v813
        %v815 = vrot.slane %v789, %v814
        %v816 = vlaneseq
        %v817 = vshrl.u32 %v816, 7
        %v818 = vsub.s32 1, %v817
        %v819 = vrot.slane %v790, %v818
        %v820 = vmul.f32 %v810, %v815
        %v821 = vmul.f32 %v810, %v819
        %v822 = vadd.f32 %v806, %v820
        %v823 = vadd.f32 %v807, %v821
        %v824 = vadd.f32 %v777, %v822
        %v825 = vadd.f32 %v778, %v823
        %s826 = scalar_lea.vmem %s5, 8
        %v827 = vld [vmem:[%s826] sm:$0x3]
        %829 = vset.pattern.permute.xlu0 0
        %830 = vperm.xlu0 %829, %v827
        %v831 = vpop.permute.xlu0 %830
        %v833 = vlaneseq
        %v834 = vshrl.u32 %v833, 7
        %v835 = vsub.s32 0, %v834
        %v836 = vrot.slane %v524, %v835
        %v837 = vlaneseq
        %v838 = vshrl.u32 %v837, 7
        %v839 = vsub.s32 0, %v838
        %v840 = vrot.slane %v525, %v839
        %v841 = vmul.f32 %v831, %v836
        %v842 = vmul.f32 %v831, %v840
        %843 = vset.pattern.permute.xlu0 1
        %844 = vperm.xlu0 %843, %v827
        %v845 = vpop.permute.xlu0 %844
        %v847 = vlaneseq
        %v848 = vshrl.u32 %v847, 7
        %v849 = vsub.s32 1, %v848
        %v850 = vrot.slane %v524, %v849
        %v851 = vlaneseq
        %v852 = vshrl.u32 %v851, 7
        %v853 = vsub.s32 1, %v852
        %v854 = vrot.slane %v525, %v853
        %v855 = vmul.f32 %v845, %v850
        %v856 = vmul.f32 %v845, %v854
        %v857 = vadd.f32 %v841, %v855
        %v858 = vadd.f32 %v842, %v856
        %v859 = vadd.f32 %v824, %v857
        %v860 = vadd.f32 %v825, %v858
        %861 = vrot.lane.b32.xlu0 %v524, 1
        %v862 = vpop.permute.xlu0 %861
        %863 = vrot.lane.b32.xlu0 %v525, 1
        %v864 = vpop.permute.xlu0 %863
        %v865 = vsel %vm699, %v862, %v864
        %v866 = vsel %vm699, %v864, %v862
        %v867 = vmul.f32 %v866, %v715
        %v868 = vmul.f32 %v865, %v719
        %v869 = vmul.f32 %v524, %v735
        %v870 = vmul.f32 %v525, %v739
        %v871 = vadd.f32 %v867, %v869
        %v872 = vadd.f32 %v868, %v870
        %s873 = scalar_lea.vmem %s5, 10
        %v874 = vld [vmem:[%s873] sm:$0x3]
        %876 = vset.pattern.permute.xlu0 0
        %877 = vperm.xlu0 %876, %v874
        %v878 = vpop.permute.xlu0 %877
        %v880 = vlaneseq
        %v881 = vshrl.u32 %v880, 7
        %v882 = vsub.s32 0, %v881
        %v883 = vrot.slane %v871, %v882
        %v884 = vlaneseq
        %v885 = vshrl.u32 %v884, 7
        %v886 = vsub.s32 0, %v885
        %v887 = vrot.slane %v872, %v886
        %v888 = vmul.f32 %v878, %v883
        %v889 = vmul.f32 %v878, %v887
        %890 = vset.pattern.permute.xlu0 1
        %891 = vperm.xlu0 %890, %v874
        %v892 = vpop.permute.xlu0 %891
        %v894 = vlaneseq
        %v895 = vshrl.u32 %v894, 7
        %v896 = vsub.s32 1, %v895
        %v897 = vrot.slane %v871, %v896
        %v898 = vlaneseq
        %v899 = vshrl.u32 %v898, 7
        %v900 = vsub.s32 1, %v899
        %v901 = vrot.slane %v872, %v900
        %v902 = vmul.f32 %v892, %v897
        %v903 = vmul.f32 %v892, %v901
        %v904 = vadd.f32 %v888, %v902
        %v905 = vadd.f32 %v889, %v903
        %v906 = vadd.f32 %v859, %v904
        %v907 = vadd.f32 %v860, %v905
        %908 = vrot.lane.b32.xlu0 %v524, 16
        %v909 = vpop.permute.xlu0 %908
        %910 = vrot.lane.b32.xlu0 %v525, 16
        %v911 = vpop.permute.xlu0 %910
        %vm912 = vcmp.lt.s32.totalorder %v531, 16
        %v913 = vsel %vm912, %v909, %v911
        %v914 = vsel %vm912, %v911, %v909
        %v915 = vlaneseq
        %v916 = vshrl.u32 %v915, 7
        %v917 = vsub.s32 0, %v916
        %v918 = vrot.slane %v404, %v917
        %v919 = vlaneseq
        %v920 = vshrl.u32 %v919, 7
        %v921 = vsub.s32 4, %v920
        %v922 = vrot.slane %v404, %v921
        %v925 = vlaneseq
        %v926 = vshrl.u32 %v925, 7
        %v927 = vsub.s32 0, %v926
        %v928 = vrot.slane %v918, %v927
        %v929 = vlaneseq
        %v930 = vshrl.u32 %v929, 7
        %v931 = vsub.s32 0, %v930
        %v932 = vrot.slane %v922, %v931
        %v933 = vmul.f32 %v914, %v928
        %v934 = vmul.f32 %v913, %v932
        %v935 = vlaneseq
        %v936 = vshrl.u32 %v935, 7
        %v937 = vsub.s32 1, %v936
        %v938 = vrot.slane %v403, %v937
        %v939 = vlaneseq
        %v940 = vshrl.u32 %v939, 7
        %v941 = vsub.s32 5, %v940
        %v942 = vrot.slane %v403, %v941
        %v945 = vlaneseq
        %v946 = vshrl.u32 %v945, 7
        %v947 = vsub.s32 1, %v946
        %v948 = vrot.slane %v938, %v947
        %v949 = vlaneseq
        %v950 = vshrl.u32 %v949, 7
        %v951 = vsub.s32 1, %v950
        %v952 = vrot.slane %v942, %v951
        %v953 = vmul.f32 %v524, %v948
        %v954 = vmul.f32 %v525, %v952
        %v955 = vadd.f32 %v933, %v953
        %v956 = vadd.f32 %v934, %v954
        %957 = vrot.lane.b32.xlu0 %v955, 127
        %v958 = vpop.permute.xlu0 %957
        %959 = vrot.lane.b32.xlu0 %v956, 127
        %v960 = vpop.permute.xlu0 %959
        %v961 = vsel %vm583, %v958, %v960
        %v962 = vsel %vm583, %v960, %v958
        %v963 = vmul.f32 %v961, %v599
        %v964 = vmul.f32 %v962, %v603
        %v965 = vmul.f32 %v955, %v619
        %v966 = vmul.f32 %v956, %v623
        %v967 = vadd.f32 %v963, %v965
        %v968 = vadd.f32 %v964, %v966
        %s969 = scalar_lea.vmem %s5, 12
        %v970 = vld [vmem:[%s969] sm:$0x3]
        %972 = vset.pattern.permute.xlu0 0
        %973 = vperm.xlu0 %972, %v970
        %v974 = vpop.permute.xlu0 %973
        %v976 = vlaneseq
        %v977 = vshrl.u32 %v976, 7
        %v978 = vsub.s32 0, %v977
        %v979 = vrot.slane %v967, %v978
        %v980 = vlaneseq
        %v981 = vshrl.u32 %v980, 7
        %v982 = vsub.s32 0, %v981
        %v983 = vrot.slane %v968, %v982
        %v984 = vmul.f32 %v974, %v979
        %v985 = vmul.f32 %v974, %v983
        %986 = vset.pattern.permute.xlu0 1
        %987 = vperm.xlu0 %986, %v970
        %v988 = vpop.permute.xlu0 %987
        %v990 = vlaneseq
        %v991 = vshrl.u32 %v990, 7
        %v992 = vsub.s32 1, %v991
        %v993 = vrot.slane %v967, %v992
        %v994 = vlaneseq
        %v995 = vshrl.u32 %v994, 7
        %v996 = vsub.s32 1, %v995
        %v997 = vrot.slane %v968, %v996
        %v998 = vmul.f32 %v988, %v993
        %v999 = vmul.f32 %v988, %v997
        %v1000 = vadd.f32 %v984, %v998
        %v1001 = vadd.f32 %v985, %v999
        %v1002 = vadd.f32 %v906, %v1000
        %v1003 = vadd.f32 %v907, %v1001
        %s1004 = scalar_lea.vmem %s5, 14
        %v1005 = vld [vmem:[%s1004] sm:$0x3]
        %1007 = vset.pattern.permute.xlu0 0
        %1008 = vperm.xlu0 %1007, %v1005
        %v1009 = vpop.permute.xlu0 %1008
        %v1011 = vlaneseq
        %v1012 = vshrl.u32 %v1011, 7
        %v1013 = vsub.s32 0, %v1012
        %v1014 = vrot.slane %v955, %v1013
        %v1015 = vlaneseq
        %v1016 = vshrl.u32 %v1015, 7
        %v1017 = vsub.s32 0, %v1016
        %v1018 = vrot.slane %v956, %v1017
        %v1019 = vmul.f32 %v1009, %v1014
        %v1020 = vmul.f32 %v1009, %v1018
        %1021 = vset.pattern.permute.xlu0 1
        %1022 = vperm.xlu0 %1021, %v1005
        %v1023 = vpop.permute.xlu0 %1022
        %v1025 = vlaneseq
        %v1026 = vshrl.u32 %v1025, 7
        %v1027 = vsub.s32 1, %v1026
        %v1028 = vrot.slane %v955, %v1027
        %v1029 = vlaneseq
        %v1030 = vshrl.u32 %v1029, 7
        %v1031 = vsub.s32 1, %v1030
        %v1032 = vrot.slane %v956, %v1031
        %v1033 = vmul.f32 %v1023, %v1028
        %v1034 = vmul.f32 %v1023, %v1032
        %v1035 = vadd.f32 %v1019, %v1033
        %v1036 = vadd.f32 %v1020, %v1034
        %v1037 = vadd.f32 %v1002, %v1035
        %v1038 = vadd.f32 %v1003, %v1036
        %1039 = vrot.lane.b32.xlu0 %v955, 1
        %v1040 = vpop.permute.xlu0 %1039
        %1041 = vrot.lane.b32.xlu0 %v956, 1
        %v1042 = vpop.permute.xlu0 %1041
        %v1043 = vsel %vm699, %v1040, %v1042
        %v1044 = vsel %vm699, %v1042, %v1040
        %v1045 = vmul.f32 %v1044, %v715
        %v1046 = vmul.f32 %v1043, %v719
        %v1047 = vmul.f32 %v955, %v735
        %v1048 = vmul.f32 %v956, %v739
        %v1049 = vadd.f32 %v1045, %v1047
        %v1050 = vadd.f32 %v1046, %v1048
        %s1051 = scalar_lea.vmem %s5, 16
        %v1052 = vld [vmem:[%s1051] sm:$0x3]
        %1054 = vset.pattern.permute.xlu0 0
        %1055 = vperm.xlu0 %1054, %v1052
        %v1056 = vpop.permute.xlu0 %1055
        %v1058 = vlaneseq
        %v1059 = vshrl.u32 %v1058, 7
        %v1060 = vsub.s32 0, %v1059
        %v1061 = vrot.slane %v1049, %v1060
        %v1062 = vlaneseq
        %v1063 = vshrl.u32 %v1062, 7
        %v1064 = vsub.s32 0, %v1063
        %v1065 = vrot.slane %v1050, %v1064
        %v1066 = vmul.f32 %v1056, %v1061
        %v1067 = vmul.f32 %v1056, %v1065
        %1068 = vset.pattern.permute.xlu0 1
        %1069 = vperm.xlu0 %1068, %v1052
        %v1070 = vpop.permute.xlu0 %1069
        %v1072 = vlaneseq
        %v1073 = vshrl.u32 %v1072, 7
        %v1074 = vsub.s32 1, %v1073
        %v1075 = vrot.slane %v1049, %v1074
        %v1076 = vlaneseq
        %v1077 = vshrl.u32 %v1076, 7
        %v1078 = vsub.s32 1, %v1077
        %v1079 = vrot.slane %v1050, %v1078
        %v1080 = vmul.f32 %v1070, %v1075
        %v1081 = vmul.f32 %v1070, %v1079
        %v1082 = vadd.f32 %v1066, %v1080
        %v1083 = vadd.f32 %v1067, %v1081
        %v1084 = vadd.f32 %v1037, %v1082
        %v1085 = vadd.f32 %v1038, %v1083
        %v1086 = vld [vmem:[%s6] sm:$0x3]
        %1088 = vset.pattern.permute.xlu0 0
        %1089 = vperm.xlu0 %1088, %v1086
        %v1090 = vpop.permute.xlu0 %1089
        %v1092 = vmul.f32 %v393, %v1090
        %v1093 = vmul.f32 %v397, %v1090
        %v1094 = vadd.f32 %v1084, %v1092
        %v1095 = vadd.f32 %v1085, %v1093
        %v1096 = vmul.f32 %v1094, %v393
        %v1097 = vmul.f32 %v1095, %v397
        %vm1098 = vcmp.ge.f32.partialorder %v1096, 0.0
        %vm1099 = vcmp.ge.f32.partialorder %v1097, 0.0
        %v1100 = vmul.f32 %v1096, 0.01
        %v1101 = vmul.f32 %v1097, 0.01
        %v1102 = vsel %vm1098, %v1096, %v1100
        %v1103 = vsel %vm1099, %v1097, %v1101
        %v1104 = vld [vmem:[%s7] sm:$0xff]
        %1106 = vset.pattern.permute.xlu0 0
        %1107 = vperm.xlu0 %1106, %v1104
        %v1108 = vpop.permute.xlu0 %1107
        %v1110 = vlaneseq
        %v1111 = vshrl.u32 %v1110, 7
        %v1112 = vsub.s32 0, %v1111
        %v1113 = vrot.slane %v1102, %v1112
        %v1114 = vlaneseq
        %v1115 = vshrl.u32 %v1114, 7
        %v1116 = vsub.s32 0, %v1115
        %v1117 = vrot.slane %v1103, %v1116
        %v1118 = vmul.f32 %v1108, %v1113
        %v1119 = vmul.f32 %v1108, %v1117
        %1120 = vset.pattern.permute.xlu0 1
        %1121 = vperm.xlu0 %1120, %v1104
        %v1122 = vpop.permute.xlu0 %1121
        %v1124 = vlaneseq
        %v1125 = vshrl.u32 %v1124, 7
        %v1126 = vsub.s32 1, %v1125
        %v1127 = vrot.slane %v1102, %v1126
        %v1128 = vlaneseq
        %v1129 = vshrl.u32 %v1128, 7
        %v1130 = vsub.s32 1, %v1129
        %v1131 = vrot.slane %v1103, %v1130
        %v1132 = vmul.f32 %v1122, %v1127
        %v1133 = vmul.f32 %v1122, %v1131
        %v1134 = vadd.f32 %v1118, %v1132
        %v1135 = vadd.f32 %v1119, %v1133
        %v1136 = vld [vmem:[%s8] sm:$0xff]
        %1138 = vset.pattern.permute.xlu0 0
        %1139 = vperm.xlu0 %1138, %v1136
        %v1140 = vpop.permute.xlu0 %1139
        %v1142 = vmul.f32 %v1140, %v425
        %v1143 = vmul.f32 %v1140, %v429
        %1144 = vset.pattern.permute.xlu0 1
        %1145 = vperm.xlu0 %1144, %v1136
        %v1146 = vpop.permute.xlu0 %1145
        %v1148 = vmul.f32 %v1146, %v449
        %v1149 = vmul.f32 %v1146, %v453
        %v1150 = vadd.f32 %v1142, %v1148
        %v1151 = vadd.f32 %v1143, %v1149
        %1152 = vset.pattern.permute.xlu0 2
        %1153 = vperm.xlu0 %1152, %v1136
        %v1154 = vpop.permute.xlu0 %1153
        %v1156 = vmul.f32 %v1154, %v475
        %v1157 = vmul.f32 %v1154, %v479
        %v1158 = vadd.f32 %v1150, %v1156
        %v1159 = vadd.f32 %v1151, %v1157
        %1160 = vset.pattern.permute.xlu0 3
        %1161 = vperm.xlu0 %1160, %v1136
        %v1162 = vpop.permute.xlu0 %1161
        %v1164 = vmul.f32 %v1162, %v501
        %v1165 = vmul.f32 %v1162, %v505
        %v1166 = vadd.f32 %v1158, %v1164
        %v1167 = vadd.f32 %v1159, %v1165
        %v1168 = vadd.f32 %v1134, %v1166
        %v1169 = vadd.f32 %v1135, %v1167
        %v1170 = vld [vmem:[%s9] sm:$0xff]
        %1172 = vset.pattern.permute.xlu0 0
        %1173 = vperm.xlu0 %1172, %v1170
        %v1174 = vpop.permute.xlu0 %1173
        %v1176 = vmul.f32 %v393, %v1174
        %v1177 = vmul.f32 %v397, %v1174
        %v1178 = vadd.f32 %v1168, %v1176
        %v1179 = vadd.f32 %v1169, %v1177
        %vm1180 = vcmp.ge.f32.partialorder %v1178, 0.0
        %vm1181 = vcmp.ge.f32.partialorder %v1179, 0.0
        %v1182 = vmul.f32 %v1178, 0.01
        %v1183 = vmul.f32 %v1179, 0.01
        %v1184 = vsel %vm1180, %v1178, %v1182
        %v1185 = vsel %vm1181, %v1179, %v1183
        %1186 = vst [vmem:[%s365] sm:$0xff] %v1184
        %1187 = vst [vmem:[%s365 + $0x8] sm:$0xff] %v1185
        %s1188 = sand.u32 %s252, 1
        %s1189 = scalar_lea.sflag [#allocation3], %s1188
        %s1190 = sand.u32 %s252, 1
        %s1191 = smul.addr %s1190, 16
        %s1192 = scalar_lea.vmem [#allocation2], %s1191
        // Predicated region
        $region61: #{tpu_custom_call.1} parent=59 // pred_check
          %p1193 = pneg %p262
        $region62: #{tpu_custom_call.1} parent=59 // pred_check_branch
          %1195 = sbr.rel (%p1193) target = $region64
        $region63: #{tpu_custom_call.1} parent=59 // pred_region
          %s1197 = ssub.s32 256, 256
          %1198 = vsyncadd %s1189, %s1197
          %s1199 = smul.addr %s24, 2
          %s1200 = smul.addr %s1199, 128
          %s1201 = scalar_lea.hbm %s10, %s1200
          %s1203 = sshll.u32 %s1192, 4
          %s1204 = int_to_ptr.vmem [resolvable:$true] %s1203
          %1206 = dma.vmem_to_hbm [thread:$0]  %s1204, 256, %s1201, %s1189
        $region64: #{tpu_custom_call.1} parent=59 // pred_fallthru
          _
      $region60: #{tpu_custom_call.1} parent=5 // pred_fallthru
        _
      %p1207 = scmp.le.s32.totalorder 2, %s19
      // Predicated region
      $region65: #{tpu_custom_call.1} parent=5 // pred_check
        %p1208 = pneg %p1207
      $region66: #{tpu_custom_call.1} parent=5 // pred_check_branch
        %1210 = sbr.rel (%p1208) target = $region68
      $region67: #{tpu_custom_call.1} parent=5 // pred_region
        %s1211 = ssub.s32 %s19, 2
        // Predicated region
        $region69: #{tpu_custom_call.1} parent=67 // pred_check
          %p1212 = pneg %p268
        $region70: #{tpu_custom_call.1} parent=67 // pred_check_branch
          %1214 = sbr.rel (%p1212) target = $region72
        $region71: #{tpu_custom_call.1} parent=67 // pred_region
          %s1215 = sand.u32 %s253, 1
          %s1216 = scalar_lea.sflag [#allocation3], %s1215
          %s1217 = sand.u32 %s253, 1
          %s1218 = smul.addr %s1217, 16
          %s1219 = scalar_lea.vmem [#allocation2], %s1218
          %1220 = dma.done %s1216, 256
        $region72: #{tpu_custom_call.1} parent=67 // pred_fallthru
          _
      $region68: #{tpu_custom_call.1} parent=5 // pred_fallthru
        _
    $region6: #{tpu_custom_call.1} parent=1 // loop_footer
      %s23 = sadd.s32 1, %s19
    $region7: #{tpu_custom_call.1} parent=1 // loop_footer_branch
      %18 = sbr.rel target = $region3
    $region8: #{tpu_custom_call.1} parent=1 // loop_exit
      _
    %1221 = vsyncpa [#allocation3], 1
    %s1222 = scalar_lea.sflag [#allocation3], 1
    %1223 = vsyncpa %s1222, 1

</llo_original>
